<compile_context>
chip_gen: v5e
topology: v5e:2x2
jax: 0.10.0
libtpu: 0.0.40
codegen_flags: <defaults>
</compile_context>

<pallas_src>
import math
import functools

import numpy as np
import jax
import jax.numpy as jnp
from jax.experimental import pallas as pl
from jax.experimental.pallas import tpu as pltpu

# ----------------------------- problem sizes --------------------------------
BATCH = 2
SEQ = 8          # token 0 is the "special" token that is not conditioned
D_MODEL = 32
NHEAD = 4
DIM_FF = 64      # dim_feedforward (small for the test; default is 2048)
DIM_MAP = 64     # dim_map_embed   (small for the test; default is 512)
DIM_T = 32       # dim_t_embed     (small for the test; default is 256)
EPS = 1e-5

SLAB_LANES = 128  # lane width of the packed weight slabs

# ---------------- packed weight-slab layout (static, 8-aligned rows) ---------
MAT_DEFS = [
    ("map_w1", DIM_MAP, D_MODEL),
    ("map_w2", D_MODEL, D_MODEL),
    ("map_w3", D_MODEL, D_MODEL),
    ("enc1_wqkv", D_MODEL, 3 * D_MODEL),
    ("enc1_wo", D_MODEL, D_MODEL),
    ("enc1_ff_w1", D_MODEL, DIM_FF),
    ("enc1_ff_w2", DIM_FF, D_MODEL),
    ("enc2_wqkv", D_MODEL, 3 * D_MODEL),
    ("enc2_wo", D_MODEL, D_MODEL),
    ("enc2_ff_w1", D_MODEL, DIM_FF),
    ("enc2_ff_w2", DIM_FF, D_MODEL),
    ("t_w1", DIM_T, D_MODEL),
    ("t_w2", D_MODEL, D_MODEL),
    ("skip_w", D_MODEL, D_MODEL),
]
VEC_DEFS = [
    ("map_b1", D_MODEL), ("map_b2", D_MODEL), ("map_b3", D_MODEL),
    ("ln_in_g", D_MODEL), ("ln_in_b", D_MODEL),
    ("enc1_bqkv", 3 * D_MODEL), ("enc1_bo", D_MODEL),
    ("enc1_ff_b1", DIM_FF), ("enc1_ff_b2", D_MODEL),
    ("enc1_n1g", D_MODEL), ("enc1_n1b", D_MODEL),
    ("enc1_n2g", D_MODEL), ("enc1_n2b", D_MODEL),
    ("t_b1", D_MODEL), ("t_b2", D_MODEL),
    ("ln_out_g", D_MODEL), ("ln_out_b", D_MODEL),
    ("enc2_bqkv", 3 * D_MODEL), ("enc2_bo", D_MODEL),
    ("enc2_ff_b1", DIM_FF), ("enc2_ff_b2", D_MODEL),
    ("enc2_n1g", D_MODEL), ("enc2_n1b", D_MODEL),
    ("enc2_n2g", D_MODEL), ("enc2_n2b", D_MODEL),
    ("skip_b", D_MODEL), ("skip_g", D_MODEL), ("skip_beta", D_MODEL),
]

MAT_OFFSETS = {}
_off = 0
for _name, _rin, _rout in MAT_DEFS:
    MAT_OFFSETS[_name] = (_off, _rin, _rout)
    _off += _rin                      # all row counts are multiples of 8
MAT_ROWS = _off                       # 544

VEC_OFFSETS = {n: (i, w) for i, (n, w) in enumerate(VEC_DEFS)}
VEC_ROWS = ((len(VEC_DEFS) + 7) // 8) * 8   # 32 rows (padded to 8-multiple)


def pack_params(p):
    """Pack every weight/bias/LN parameter into two lane-aligned f32 slabs."""
    wmat = jnp.zeros((MAT_ROWS, SLAB_LANES), jnp.float32)
    for name, rin, rout in MAT_DEFS:
        off = MAT_OFFSETS[name][0]
        wmat = wmat.at[off:off + rin, :rout].set(p[name].astype(jnp.float32))
    wvec = jnp.zeros((VEC_ROWS, SLAB_LANES), jnp.float32)
    for name, width in VEC_DEFS:
        r = VEC_OFFSETS[name][0]
        wvec = wvec.at[r, :width].set(p[name].reshape(-1).astype(jnp.float32))
    return wmat, wvec


# ------------- kernel-side static slab accessors (ref slices, no full load) --
def _mat(wm_ref, name):
    off, rin, rout = MAT_OFFSETS[name]
    return wm_ref[off:off + rin, :rout]


def _vec(wv_ref, name):
    r, width = VEC_OFFSETS[name]
    return wv_ref[r:r + 1, :width]


# ----------------------------- shared math ----------------------------------
def _layernorm(x, g, b):
    mu = jnp.mean(x, axis=-1, keepdims=True)
    var = jnp.mean(jnp.square(x - mu), axis=-1, keepdims=True)
    return (x - mu) * jax.lax.rsqrt(var + EPS) * g + b


def _gelu(x):
    # TODO(synk): PyTorch nn.GELU() is the exact erf GELU; the tanh approximation
    # is used because erf has no guaranteed Mosaic lowering (max dev ~1e-3).
    c = math.sqrt(2.0 / math.pi)
    return 0.5 * x * (1.0 + jnp.tanh(c * (x + 0.044715 * x * x * x)))


# ----------------------------- kernel-side ops -------------------------------
def _mha(h, wqkv, bqkv, wo, bo, nhead, attn_bias):
    """Self-attention over a folded [nb*S, D] block.

    attn_bias is 0 within a batch element and -1e30 across batch elements,
    so the folded batch stays block-diagonal.  Heads are concatenated and the
    output projection is a single matmul."""
    R, D = h.shape
    dh = D // nhead
    qkv = jnp.dot(h, wqkv, preferred_element_type=jnp.float32) + bqkv   # [R, 3D]
    q = qkv[:, :D] * (1.0 / math.sqrt(dh))
    k = qkv[:, D:2 * D]
    v = qkv[:, 2 * D:]
    heads = []
    for hh in range(nhead):                      # static unroll over heads
        sl = slice(hh * dh, (hh + 1) * dh)
        s = jax.lax.dot_general(q[:, sl], k[:, sl], (((1,), (1,)), ((), ())),
                                preferred_element_type=jnp.float32)     # [R, R]
        s = s + attn_bias
        s = s - jnp.max(s, axis=-1, keepdims=True)
        e = jnp.exp(s)
        p = e / jnp.sum(e, axis=-1, keepdims=True)
        heads.append(jnp.dot(p, v[:, sl], preferred_element_type=jnp.float32))
    o = jnp.concatenate(heads, axis=-1)          # [R, D] -> single output proj
    return jnp.dot(o, wo, preferred_element_type=jnp.float32) + bo


def _encoder_layer(h, wm_ref, wv_ref, pre, nhead, attn_bias):
    """nn.TransformerEncoderLayer, post-norm, ReLU FFN, eval mode (no dropout)."""
    sa = _mha(h,
              _mat(wm_ref, pre + "_wqkv"), _vec(wv_ref, pre + "_bqkv"),
              _mat(wm_ref, pre + "_wo"), _vec(wv_ref, pre + "_bo"),
              nhead, attn_bias)
    h = _layernorm(h + sa, _vec(wv_ref, pre + "_n1g"), _vec(wv_ref, pre + "_n1b"))
    ff = jnp.maximum(
        jnp.dot(h, _mat(wm_ref, pre + "_ff_w1"),
                preferred_element_type=jnp.float32) + _vec(wv_ref, pre + "_ff_b1"),
        0.0)
    ff = jnp.dot(ff, _mat(wm_ref, pre + "_ff_w2"),
                 preferred_element_type=jnp.float32) + _vec(wv_ref, pre + "_ff_b2")
    return _layernorm(h + ff, _vec(wv_ref, pre + "_n2g"), _vec(wv_ref, pre + "_n2b"))


def cond_encoder_kernel(src_ref, map_ref, tsin_ref, mask_ref, bias_ref,
                        wm_ref, wv_ref, out_ref, *, nb, seq, nhead):
    src = src_ref[...].astype(jnp.float32)        # [nb*S, D]
    minfo = map_ref[...].astype(jnp.float32)      # [nb*S, M]
    tok_mask = mask_ref[...]                      # [nb*S, D] (0 on token-0 rows)
    attn_bias = bias_ref[...]                     # [nb*S, nb*S] block-diag batch mask

    # ---- map_mlp: Linear -> ReLU -> Linear -> ReLU -> Linear ----------------
    m = jnp.maximum(jnp.dot(minfo, _mat(wm_ref, "map_w1"),
                            preferred_element_type=jnp.float32)
                    + _vec(wv_ref, "map_b1"), 0.0)
    m = jnp.maximum(jnp.dot(m, _mat(wm_ref, "map_w2"),
                            preferred_element_type=jnp.float32)
                    + _vec(wv_ref, "map_b2"), 0.0)
    m = jnp.dot(m, _mat(wm_ref, "map_w3"),
                preferred_element_type=jnp.float32) + _vec(wv_ref, "map_b3")
    h = src + tok_mask * m                        # h[:, 1:] += map_embed

    # ---- in_layers: LayerNorm -> GELU -> TransformerEncoderLayer ------------
    h = _layernorm(h, _vec(wv_ref, "ln_in_g"), _vec(wv_ref, "ln_in_b"))
    h = _gelu(h)
    h = _encoder_layer(h, wm_ref, wv_ref, "enc1", nhead, attn_bias)

    # ---- time_mlp tail: Linear -> ReLU -> Linear on sinusoidal embedding ----
    ts = tsin_ref[...][:, 0, :].astype(jnp.float32)               # [nb, T]
    te = jnp.maximum(jnp.dot(ts, _mat(wm_ref, "t_w1"),
                             preferred_element_type=jnp.float32)
                     + _vec(wv_ref, "t_b1"), 0.0)
    te = jnp.dot(te, _mat(wm_ref, "t_w2"),
                 preferred_element_type=jnp.float32) + _vec(wv_ref, "t_b2")
    te_full = jnp.concatenate(
        [jnp.broadcast_to(te[b:b + 1, :], (seq, te.shape[-1])) for b in range(nb)],
        axis=0)                                                    # [nb*S, D]
    h = h + tok_mask * te_full                    # h[:, 1:] += t_embed

    # ---- out_layers: LayerNorm -> GELU -> TransformerEncoderLayer -----------
    h = _layernorm(h, _vec(wv_ref, "ln_out_g"), _vec(wv_ref, "ln_out_b"))
    h = _gelu(h)
    h = _encoder_layer(h, wm_ref, wv_ref, "enc2", nhead, attn_bias)

    # ---- skip_conn: Linear -> LayerNorm, then residual add ------------------
    skip = _layernorm(
        jnp.dot(src, _mat(wm_ref, "skip_w"),
                preferred_element_type=jnp.float32) + _vec(wv_ref, "skip_b"),
        _vec(wv_ref, "skip_g"), _vec(wv_ref, "skip_beta"))
    out_ref[...] = (skip + h).astype(out_ref.dtype)


# ----------------------------- plain-JAX glue --------------------------------
def sinusoidal_emb(t, dim, t_min=0.001, t_max=10.0):
    # TODO(synk): SinusoidalEmb source not provided; standard log-spaced sin/cos
    # embedding of the scalar t over periods in [T_min, T_max].
    half = dim // 2
    i = jnp.arange(half, dtype=jnp.float32) / max(half - 1, 1)
    periods = t_min * (t_max / t_min) ** i
    freqs = 2.0 * math.pi / periods
    ang = t.astype(jnp.float32) * freqs[None, :]           # [B, half]
    return jnp.concatenate([jnp.sin(ang), jnp.cos(ang)], axis=-1)


def map_index(fmap, loc):
    # TODO(synk): MapIndexLayer source not provided; nearest-neighbour gather of
    # the NCHW feature map at normalised (x, y) locations in [0, 1].
    B, C, H, W = fmap.shape
    x = jnp.clip(jnp.round(loc[..., 0] * (W - 1)).astype(jnp.int32), 0, W - 1)
    y = jnp.clip(jnp.round(loc[..., 1] * (H - 1)).astype(jnp.int32), 0, H - 1)
    bidx = jnp.arange(B)[:, None]
    return fmap[bidx, :, y, x]                              # [B, S_loc, C]


def _batch_per_block(batch):
    """Fold the whole batch into one block on single-TC chips; split on v7x."""
    kind = ""
    try:
        kind = jax.devices()[0].device_kind.lower().replace(" ", "")
    except Exception:
        pass
    if batch > 1 and ("v7" in kind or "tpu7" in kind):
        return 1          # one batch element per TensorCore (2 TCs on v7x)
    return batch          # v5e / v6e: single grid step, batch folded


def _cost_estimate(batch):
    R, D, M, T, F, H = batch * SEQ, D_MODEL, DIM_MAP, DIM_T, DIM_FF, NHEAD
    fl = 2 * R * M * D + 4 * R * D * D            # map mlp
    fl += 2 * batch * T * D + 2 * batch * D * D   # time mlp
    for _ in range(2):                            # the two encoder layers
        fl += 2 * R * D * (3 * D)                 # qkv projection
        fl += 4 * H * R * R * (D // H)            # scores + p@v
        fl += 2 * R * D * D                       # output projection
        fl += 4 * R * D * F                       # feed-forward
    fl += 2 * R * D * D                           # skip projection
    trans = 2 * H * R * R + 2 * R * D + 10 * R    # softmax exp + gelu tanh + rsqrt
    byt = 4 * (2 * R * D + R * M + batch * T
               + MAT_ROWS * SLAB_LANES + VEC_ROWS * SLAB_LANES)
    return pl.CostEstimate(flops=int(fl), transcendentals=int(trans),
                           bytes_accessed=int(byt))


@functools.partial(jax.jit, static_argnames=("nb",))
def _forward(src, t, fmap, loc, wmat, wvec, nb):
    B, S, D = src.shape
    M = fmap.shape[1]

    tsin = sinusoidal_emb(t, DIM_T)[:, None, :]              # [B, 1, T]
    # One gather per token; token 0 reuses location 0 and is masked inside the
    # kernel (removes the zero-row concat of the original wrapper).
    s_idx = jnp.maximum(jnp.arange(S) - 1, 0)
    map_full = map_index(fmap, loc[:, s_idx, :])             # [B, S, M]

    src2 = src.reshape(B * S, D)
    map2 = map_full.reshape(B * S, M)

    rows = nb * S
    # token mask (0 on token-0 rows) and block-diagonal attention bias,
    # baked as constants (numpy -> embedded by jit).
    tok_mask = jnp.asarray(
        np.repeat((np.tile(np.arange(S), nb) >= 1).astype(np.float32)[:, None],
                  D, axis=1))                                 # [rows, D]
    bidx = np.repeat(np.arange(nb), S)
    attn_bias = jnp.asarray(
        np.where(bidx[:, None] == bidx[None, :], 0.0, -1e30).astype(np.float32))

    kernel = functools.partial(cond_encoder_kernel, nb=nb, seq=S, nhead=NHEAD)
    out = pl.pallas_call(
        kernel,
        out_shape=jax.ShapeDtypeStruct((B * S, D), src.dtype),
        grid=(B // nb,),
        in_specs=[
            pl.BlockSpec((rows, D), lambda i: (i, 0)),                # src
            pl.BlockSpec((rows, M), lambda i: (i, 0)),                # map features
            pl.BlockSpec((nb, 1, DIM_T), lambda i: (i, 0, 0)),        # sin emb
            pl.BlockSpec((rows, D), lambda i: (0, 0)),                # token mask
            pl.BlockSpec((rows, rows), lambda i: (0, 0)),             # attn bias
            pl.BlockSpec((MAT_ROWS, SLAB_LANES), lambda i: (0, 0)),   # weight slab
            pl.BlockSpec((VEC_ROWS, SLAB_LANES), lambda i: (0, 0)),   # bias/LN slab
        ],
        out_specs=pl.BlockSpec((rows, D), lambda i: (i, 0)),
        compiler_params=pltpu.CompilerParams(dimension_semantics=("parallel",)),
        cost_estimate=_cost_estimate(B),
    )(src2, map2, tsin, tok_mask, attn_bias, wmat, wvec)
    return out.reshape(B, S, D)


def conditional_encoder_layer(src, t, fmap, loc, wmat, wvec):
    nb = _batch_per_block(src.shape[0])
    return _forward(src, t, fmap, loc, wmat, wvec, nb=nb)


# ----------------------------- pure-JAX reference ----------------------------
def _ref_mha(h, wqkv, bqkv, wo, bo, nhead):
    B, S, D = h.shape
    dh = D // nhead
    qkv = h @ wqkv + bqkv
    q, k, v = jnp.split(qkv, 3, axis=-1)
    def heads(x):
        return x.reshape(B, S, nhead, dh).transpose(0, 2, 1, 3)
    q, k, v = heads(q), heads(k), heads(v)
    s = (q @ k.transpose(0, 1, 3, 2)) / math.sqrt(dh)
    a = jax.nn.softmax(s, axis=-1)
    o = (a @ v).transpose(0, 2, 1, 3).reshape(B, S, D)
    return o @ wo + bo


def _ref_encoder_layer(h, p, pre, nhead):
    sa = _ref_mha(h, p[f"{pre}_wqkv"], p[f"{pre}_bqkv"],
                  p[f"{pre}_wo"], p[f"{pre}_bo"], nhead)
    h = _layernorm(h + sa, p[f"{pre}_n1g"], p[f"{pre}_n1b"])
    ff = jax.nn.relu(h @ p[f"{pre}_ff_w1"] + p[f"{pre}_ff_b1"])
    ff = ff @ p[f"{pre}_ff_w2"] + p[f"{pre}_ff_b2"]
    return _layernorm(h + ff, p[f"{pre}_n2g"], p[f"{pre}_n2b"])


def reference_forward(src, t, fmap, loc, p):
    map_info = map_index(fmap, loc)
    m = jax.nn.relu(map_info @ p["map_w1"] + p["map_b1"])
    m = jax.nn.relu(m @ p["map_w2"] + p["map_b2"])
    m = m @ p["map_w3"] + p["map_b3"]
    h = src.at[:, 1:].add(m)
    h = _gelu(_layernorm(h, p["ln_in_g"], p["ln_in_b"]))
    h = _ref_encoder_layer(h, p, "enc1", NHEAD)
    ts = sinusoidal_emb(t, DIM_T)
    te = jax.nn.relu(ts @ p["t_w1"] + p["t_b1"]) @ p["t_w2"] + p["t_b2"]
    h = h.at[:, 1:].add(te[:, None, :])
    h = _gelu(_layernorm(h, p["ln_out_g"], p["ln_out_b"]))
    h = _ref_encoder_layer(h, p, "enc2", NHEAD)
    skip = _layernorm(src @ p["skip_w"] + p["skip_b"], p["skip_g"], p["skip_beta"])
    return skip + h


# ----------------------------- parameter init --------------------------------
def init_params(key):
    p = {}
    ks = iter(jax.random.split(key, 64))

    def lin(fan_in, fan_out):
        bound = 1.0 / math.sqrt(fan_in)
        w = jax.random.uniform(next(ks), (fan_in, fan_out), jnp.float32,
                               -bound, bound)   # stored transposed (y = x @ w + b)
        b = jax.random.uniform(next(ks), (1, fan_out), jnp.float32, -bound, bound)
        return w, b

    def ln_pair():
        return jnp.ones((1, D_MODEL), jnp.float32), jnp.zeros((1, D_MODEL), jnp.float32)

    p["map_w1"], p["map_b1"] = lin(DIM_MAP, D_MODEL)
    p["map_w2"], p["map_b2"] = lin(D_MODEL, D_MODEL)
    p["map_w3"], p["map_b3"] = lin(D_MODEL, D_MODEL)
    p["ln_in_g"], p["ln_in_b"] = ln_pair()
    for name in ("enc1", "enc2"):
        p[f"{name}_wqkv"], p[f"{name}_bqkv"] = lin(D_MODEL, 3 * D_MODEL)
        p[f"{name}_wo"], p[f"{name}_bo"] = lin(D_MODEL, D_MODEL)
        p[f"{name}_ff_w1"], p[f"{name}_ff_b1"] = lin(D_MODEL, DIM_FF)
        p[f"{name}_ff_w2"], p[f"{name}_ff_b2"] = lin(DIM_FF, D_MODEL)
        p[f"{name}_n1g"], p[f"{name}_n1b"] = ln_pair()
        p[f"{name}_n2g"], p[f"{name}_n2b"] = ln_pair()
    p["t_w1"], p["t_b1"] = lin(DIM_T, D_MODEL)
    p["t_w2"], p["t_b2"] = lin(D_MODEL, D_MODEL)
    p["ln_out_g"], p["ln_out_b"] = ln_pair()
    p["skip_w"], p["skip_b"] = lin(D_MODEL, D_MODEL)
    p["skip_g"], p["skip_beta"] = ln_pair()
    return p


# ----------------------------- main ------------------------------------------
if __name__ == "__main__":
    key = jax.random.PRNGKey(0)
    kp, ks, kt, kf, kl = jax.random.split(key, 5)
    params = init_params(kp)
    wmat, wvec = pack_params(params)     # done once, outside jit

    src = jax.random.normal(ks, (BATCH, SEQ, D_MODEL), jnp.float32)
    t = jax.random.uniform(kt, (BATCH, 1), jnp.float32, minval=0.001, maxval=10.0)
    fmap = jax.random.normal(kf, (BATCH, DIM_MAP, 16, 16), jnp.float32)
    loc = jax.random.uniform(kl, (BATCH, SEQ - 1, 2), jnp.float32)

    out = conditional_encoder_layer(src, t, fmap, loc, wmat, wvec)
    out = jax.block_until_ready(out)
    assert out.shape == (BATCH, SEQ, D_MODEL)

    ref = reference_forward(src, t, fmap, loc, params)
    err = float(jnp.max(jnp.abs(out - ref)))
    assert err < 1e-3, f"kernel mismatch vs reference: {err}"

    print("KERNEL_OK")
</pallas_src>

<mosaic_0001>
module attributes {stable_mosaic.version = 11 : i64} {
  func.func @cond_encoder_kernel(%arg0: i32, %arg1: memref<16x32xf32, #tpu.memory_space<vmem>>, %arg2: memref<16x64xf32, #tpu.memory_space<vmem>>, %arg3: memref<2x1x32xf32, #tpu.memory_space<vmem>>, %arg4: memref<16x32xf32, #tpu.memory_space<vmem>>, %arg5: memref<16x16xf32, #tpu.memory_space<vmem>>, %arg6: memref<544x128xf32, #tpu.memory_space<vmem>>, %arg7: memref<32x128xf32, #tpu.memory_space<vmem>>, %arg8: memref<16x32xf32, #tpu.memory_space<vmem>>) attributes {dimension_semantics = [#tpu.dimension_semantics<parallel>], iteration_bounds = array<i64: 1>, scalar_prefetch = 0 : i64, scratch_operands = 0 : i64, tpu.core_type = #tpu.core_type<tc>, window_params = [{transform_indices = @transform_0, window_bounds = array<i64: 16, 32>}, {transform_indices = @transform_1, window_bounds = array<i64: 16, 64>}, {transform_indices = @transform_2, window_bounds = array<i64: 2, 1, 32>}, {pipeline_mode = #tpu.pipeline_mode<synchronous>, transform_indices = @transform_3, window_bounds = array<i64: 16, 32>}, {pipeline_mode = #tpu.pipeline_mode<synchronous>, transform_indices = @transform_4, window_bounds = array<i64: 16, 16>}, {pipeline_mode = #tpu.pipeline_mode<synchronous>, transform_indices = @transform_5, window_bounds = array<i64: 544, 128>}, {pipeline_mode = #tpu.pipeline_mode<synchronous>, transform_indices = @transform_6, window_bounds = array<i64: 32, 128>}, {transform_indices = @transform_7, window_bounds = array<i64: 16, 32>}]} {
    %c0 = arith.constant 0 : index
    %c0_0 = arith.constant 0 : index
    %0 = vector.load %arg1[%c0, %c0_0] : memref<16x32xf32, #tpu.memory_space<vmem>>, vector<16x32xf32>
    %c0_1 = arith.constant 0 : index
    %c0_2 = arith.constant 0 : index
    %1 = vector.load %arg2[%c0_1, %c0_2] : memref<16x64xf32, #tpu.memory_space<vmem>>, vector<16x64xf32>
    %c0_3 = arith.constant 0 : index
    %c0_4 = arith.constant 0 : index
    %2 = vector.load %arg4[%c0_3, %c0_4] : memref<16x32xf32, #tpu.memory_space<vmem>>, vector<16x32xf32>
    %c0_5 = arith.constant 0 : index
    %c0_6 = arith.constant 0 : index
    %3 = vector.load %arg5[%c0_5, %c0_6] : memref<16x16xf32, #tpu.memory_space<vmem>>, vector<16x16xf32>
    %c0_7 = arith.constant 0 : index
    %c0_8 = arith.constant 0 : index
    %4 = vector.load %arg6[%c0_7, %c0_8] : memref<544x128xf32, #tpu.memory_space<vmem>>, vector<64x32xf32>
    %cst = arith.constant dense<0.000000e+00> : vector<16x32xf32>
    %5 = tpu.matmul %1, %4, %cst {dimension_numbers = #tpu.dot_dimension_numbers<[1], [0], [0], [1], [0, 0, 1, 1], [], []>} : vector<16x64xf32>, vector<64x32xf32>, vector<16x32xf32> -> vector<16x32xf32>
    %c0_9 = arith.constant 0 : index
    %c0_10 = arith.constant 0 : index
    %6 = vector.load %arg7[%c0_9, %c0_10] : memref<32x128xf32, #tpu.memory_space<vmem>>, vector<1x32xf32>
    %7 = vector.broadcast %6 : vector<1x32xf32> to vector<16x32xf32>
    %8 = arith.addf %5, %7 : vector<16x32xf32>
    %cst_11 = arith.constant 0.000000e+00 : f32
    %9 = vector.broadcast %cst_11 : f32 to vector<16x32xf32>
    %10 = arith.maximumf %8, %9 : vector<16x32xf32>
    %c64 = arith.constant 64 : index
    %c0_12 = arith.constant 0 : index
    %11 = vector.load %arg6[%c64, %c0_12] : memref<544x128xf32, #tpu.memory_space<vmem>>, vector<32x32xf32>
    %cst_13 = arith.constant dense<0.000000e+00> : vector<16x32xf32>
    %12 = tpu.matmul %10, %11, %cst_13 {dimension_numbers = #tpu.dot_dimension_numbers<[1], [0], [0], [1], [0, 0, 1, 1], [], []>} : vector<16x32xf32>, vector<32x32xf32>, vector<16x32xf32> -> vector<16x32xf32>
    %c1 = arith.constant 1 : index
    %c0_14 = arith.constant 0 : index
    %13 = vector.load %arg7[%c1, %c0_14] : memref<32x128xf32, #tpu.memory_space<vmem>>, vector<1x32xf32>
    %14 = vector.broadcast %13 : vector<1x32xf32> to vector<16x32xf32>
    %15 = arith.addf %12, %14 : vector<16x32xf32>
    %cst_15 = arith.constant 0.000000e+00 : f32
    %16 = vector.broadcast %cst_15 : f32 to vector<16x32xf32>
    %17 = arith.maximumf %15, %16 : vector<16x32xf32>
    %c96 = arith.constant 96 : index
    %c0_16 = arith.constant 0 : index
    %18 = vector.load %arg6[%c96, %c0_16] : memref<544x128xf32, #tpu.memory_space<vmem>>, vector<32x32xf32>
    %cst_17 = arith.constant dense<0.000000e+00> : vector<16x32xf32>
    %19 = tpu.matmul %17, %18, %cst_17 {dimension_numbers = #tpu.dot_dimension_numbers<[1], [0], [0], [1], [0, 0, 1, 1], [], []>} : vector<16x32xf32>, vector<32x32xf32>, vector<16x32xf32> -> vector<16x32xf32>
    %c2 = arith.constant 2 : index
    %c0_18 = arith.constant 0 : index
    %20 = vector.load %arg7[%c2, %c0_18] : memref<32x128xf32, #tpu.memory_space<vmem>>, vector<1x32xf32>
    %21 = vector.broadcast %20 : vector<1x32xf32> to vector<16x32xf32>
    %22 = arith.addf %19, %21 : vector<16x32xf32>
    %23 = arith.mulf %2, %22 : vector<16x32xf32>
    %24 = arith.addf %0, %23 : vector<16x32xf32>
    %c3 = arith.constant 3 : index
    %c0_19 = arith.constant 0 : index
    %25 = vector.load %arg7[%c3, %c0_19] : memref<32x128xf32, #tpu.memory_space<vmem>>, vector<1x32xf32>
    %c4 = arith.constant 4 : index
    %c0_20 = arith.constant 0 : index
    %26 = vector.load %arg7[%c4, %c0_20] : memref<32x128xf32, #tpu.memory_space<vmem>>, vector<1x32xf32>
    %cst_21 = arith.constant dense<0.000000e+00> : vector<16xf32>
    %27 = vector.multi_reduction <add>, %24, %cst_21 [1] : vector<16x32xf32> to vector<16xf32>
    %28 = vector.shape_cast %27 : vector<16xf32> to vector<16x1xf32>
    %cst_22 = arith.constant 3.200000e+01 : f32
    %29 = vector.broadcast %cst_22 : f32 to vector<16x1xf32>
    %30 = arith.divf %28, %29 : vector<16x1xf32>
    %31 = vector.broadcast %30 : vector<16x1xf32> to vector<16x32xf32>
    %32 = arith.subf %24, %31 : vector<16x32xf32>
    %33 = arith.mulf %32, %32 : vector<16x32xf32>
    %cst_23 = arith.constant dense<0.000000e+00> : vector<16xf32>
    %34 = vector.multi_reduction <add>, %33, %cst_23 [1] : vector<16x32xf32> to vector<16xf32>
    %35 = vector.shape_cast %34 : vector<16xf32> to vector<16x1xf32>
    %cst_24 = arith.constant 3.200000e+01 : f32
    %36 = vector.broadcast %cst_24 : f32 to vector<16x1xf32>
    %37 = arith.divf %35, %36 : vector<16x1xf32>
    %38 = vector.broadcast %30 : vector<16x1xf32> to vector<16x32xf32>
    %39 = arith.subf %24, %38 : vector<16x32xf32>
    %cst_25 = arith.constant 9.99999974E-6 : f32
    %40 = vector.broadcast %cst_25 : f32 to vector<16x1xf32>
    %41 = arith.addf %37, %40 : vector<16x1xf32>
    %42 = math.rsqrt %41 : vector<16x1xf32>
    %43 = vector.broadcast %42 : vector<16x1xf32> to vector<16x32xf32>
    %44 = arith.mulf %39, %43 : vector<16x32xf32>
    %45 = vector.broadcast %25 : vector<1x32xf32> to vector<16x32xf32>
    %46 = arith.mulf %44, %45 : vector<16x32xf32>
    %47 = vector.broadcast %26 : vector<1x32xf32> to vector<16x32xf32>
    %48 = arith.addf %46, %47 : vector<16x32xf32>
    %cst_26 = arith.constant 5.000000e-01 : f32
    %49 = vector.broadcast %cst_26 : f32 to vector<16x32xf32>
    %50 = arith.mulf %49, %48 : vector<16x32xf32>
    %cst_27 = arith.constant 4.471500e-02 : f32
    %51 = vector.broadcast %cst_27 : f32 to vector<16x32xf32>
    %52 = arith.mulf %51, %48 : vector<16x32xf32>
    %53 = arith.mulf %52, %48 : vector<16x32xf32>
    %54 = arith.mulf %53, %48 : vector<16x32xf32>
    %55 = arith.addf %48, %54 : vector<16x32xf32>
    %cst_28 = arith.constant 0.797884583 : f32
    %56 = vector.broadcast %cst_28 : f32 to vector<16x32xf32>
    %57 = arith.mulf %56, %55 : vector<16x32xf32>
    %58 = math.tanh %57 : vector<16x32xf32>
    %cst_29 = arith.constant 1.000000e+00 : f32
    %59 = vector.broadcast %cst_29 : f32 to vector<16x32xf32>
    %60 = arith.addf %59, %58 : vector<16x32xf32>
    %61 = arith.mulf %50, %60 : vector<16x32xf32>
    %c128 = arith.constant 128 : index
    %c0_30 = arith.constant 0 : index
    %62 = vector.load %arg6[%c128, %c0_30] : memref<544x128xf32, #tpu.memory_space<vmem>>, vector<32x96xf32>
    %c5 = arith.constant 5 : index
    %c0_31 = arith.constant 0 : index
    %63 = vector.load %arg7[%c5, %c0_31] : memref<32x128xf32, #tpu.memory_space<vmem>>, vector<1x96xf32>
    %c160 = arith.constant 160 : index
    %c0_32 = arith.constant 0 : index
    %64 = vector.load %arg6[%c160, %c0_32] : memref<544x128xf32, #tpu.memory_space<vmem>>, vector<32x32xf32>
    %c6 = arith.constant 6 : index
    %c0_33 = arith.constant 0 : index
    %65 = vector.load %arg7[%c6, %c0_33] : memref<32x128xf32, #tpu.memory_space<vmem>>, vector<1x32xf32>
    %cst_34 = arith.constant dense<0.000000e+00> : vector<16x96xf32>
    %66 = tpu.matmul %61, %62, %cst_34 {dimension_numbers = #tpu.dot_dimension_numbers<[1], [0], [0], [1], [0, 0, 1, 1], [], []>} : vector<16x32xf32>, vector<32x96xf32>, vector<16x96xf32> -> vector<16x96xf32>
    %67 = vector.broadcast %63 : vector<1x96xf32> to vector<16x96xf32>
    %68 = arith.addf %66, %67 : vector<16x96xf32>
    %69 = vector.extract_strided_slice %68 {offsets = [0, 0], sizes = [16, 32], strides = [1, 1]} : vector<16x96xf32> to vector<16x32xf32>
    %cst_35 = arith.constant 0.353553385 : f32
    %70 = vector.broadcast %cst_35 : f32 to vector<16x32xf32>
    %71 = arith.mulf %69, %70 : vector<16x32xf32>
    %72 = vector.extract_strided_slice %68 {offsets = [0, 32], sizes = [16, 32], strides = [1, 1]} : vector<16x96xf32> to vector<16x32xf32>
    %73 = vector.extract_strided_slice %68 {offsets = [0, 64], sizes = [16, 32], strides = [1, 1]} : vector<16x96xf32> to vector<16x32xf32>
    %74 = vector.extract_strided_slice %71 {offsets = [0, 0], sizes = [16, 8], strides = [1, 1]} : vector<16x32xf32> to vector<16x8xf32>
    %75 = vector.extract_strided_slice %72 {offsets = [0, 0], sizes = [16, 8], strides = [1, 1]} : vector<16x32xf32> to vector<16x8xf32>
    %cst_36 = arith.constant dense<0.000000e+00> : vector<16x16xf32>
    %76 = tpu.matmul %74, %75, %cst_36 {dimension_numbers = #tpu.dot_dimension_numbers<[1], [1], [0], [0], [0, 0, 1, 0], [], []>} : vector<16x8xf32>, vector<16x8xf32>, vector<16x16xf32> -> vector<16x16xf32>
    %77 = arith.addf %76, %3 : vector<16x16xf32>
    %cst_37 = arith.constant dense<0xFF800000> : vector<16xf32>
    %78 = vector.multi_reduction <maximumf>, %77, %cst_37 [1] : vector<16x16xf32> to vector<16xf32>
    %79 = vector.shape_cast %78 : vector<16xf32> to vector<16x1xf32>
    %80 = vector.broadcast %79 : vector<16x1xf32> to vector<16x16xf32>
    %81 = arith.subf %77, %80 : vector<16x16xf32>
    %82 = math.exp %81 : vector<16x16xf32>
    %cst_38 = arith.constant dense<0.000000e+00> : vector<16xf32>
    %83 = vector.multi_reduction <add>, %82, %cst_38 [1] : vector<16x16xf32> to vector<16xf32>
    %84 = vector.shape_cast %83 : vector<16xf32> to vector<16x1xf32>
    %85 = vector.broadcast %84 : vector<16x1xf32> to vector<16x16xf32>
    %86 = arith.divf %82, %85 : vector<16x16xf32>
    %87 = vector.extract_strided_slice %73 {offsets = [0, 0], sizes = [16, 8], strides = [1, 1]} : vector<16x32xf32> to vector<16x8xf32>
    %cst_39 = arith.constant dense<0.000000e+00> : vector<16x8xf32>
    %88 = tpu.matmul %86, %87, %cst_39 {dimension_numbers = #tpu.dot_dimension_numbers<[1], [0], [0], [1], [0, 0, 1, 1], [], []>} : vector<16x16xf32>, vector<16x8xf32>, vector<16x8xf32> -> vector<16x8xf32>
    %89 = vector.extract_strided_slice %71 {offsets = [0, 8], sizes = [16, 8], strides = [1, 1]} : vector<16x32xf32> to vector<16x8xf32>
    %90 = vector.extract_strided_slice %72 {offsets = [0, 8], sizes = [16, 8], strides = [1, 1]} : vector<16x32xf32> to vector<16x8xf32>
    %cst_40 = arith.constant dense<0.000000e+00> : vector<16x16xf32>
    %91 = tpu.matmul %89, %90, %cst_40 {dimension_numbers = #tpu.dot_dimension_numbers<[1], [1], [0], [0], [0, 0, 1, 0], [], []>} : vector<16x8xf32>, vector<16x8xf32>, vector<16x16xf32> -> vector<16x16xf32>
    %92 = arith.addf %91, %3 : vector<16x16xf32>
    %cst_41 = arith.constant dense<0xFF800000> : vector<16xf32>
    %93 = vector.multi_reduction <maximumf>, %92, %cst_41 [1] : vector<16x16xf32> to vector<16xf32>
    %94 = vector.shape_cast %93 : vector<16xf32> to vector<16x1xf32>
    %95 = vector.broadcast %94 : vector<16x1xf32> to vector<16x16xf32>
    %96 = arith.subf %92, %95 : vector<16x16xf32>
    %97 = math.exp %96 : vector<16x16xf32>
    %cst_42 = arith.constant dense<0.000000e+00> : vector<16xf32>
    %98 = vector.multi_reduction <add>, %97, %cst_42 [1] : vector<16x16xf32> to vector<16xf32>
    %99 = vector.shape_cast %98 : vector<16xf32> to vector<16x1xf32>
    %100 = vector.broadcast %99 : vector<16x1xf32> to vector<16x16xf32>
    %101 = arith.divf %97, %100 : vector<16x16xf32>
    %102 = vector.extract_strided_slice %73 {offsets = [0, 8], sizes = [16, 8], strides = [1, 1]} : vector<16x32xf32> to vector<16x8xf32>
    %cst_43 = arith.constant dense<0.000000e+00> : vector<16x8xf32>
    %103 = tpu.matmul %101, %102, %cst_43 {dimension_numbers = #tpu.dot_dimension_numbers<[1], [0], [0], [1], [0, 0, 1, 1], [], []>} : vector<16x16xf32>, vector<16x8xf32>, vector<16x8xf32> -> vector<16x8xf32>
    %104 = vector.extract_strided_slice %71 {offsets = [0, 16], sizes = [16, 8], strides = [1, 1]} : vector<16x32xf32> to vector<16x8xf32>
    %105 = vector.extract_strided_slice %72 {offsets = [0, 16], sizes = [16, 8], strides = [1, 1]} : vector<16x32xf32> to vector<16x8xf32>
    %cst_44 = arith.constant dense<0.000000e+00> : vector<16x16xf32>
    %106 = tpu.matmul %104, %105, %cst_44 {dimension_numbers = #tpu.dot_dimension_numbers<[1], [1], [0], [0], [0, 0, 1, 0], [], []>} : vector<16x8xf32>, vector<16x8xf32>, vector<16x16xf32> -> vector<16x16xf32>
    %107 = arith.addf %106, %3 : vector<16x16xf32>
    %cst_45 = arith.constant dense<0xFF800000> : vector<16xf32>
    %108 = vector.multi_reduction <maximumf>, %107, %cst_45 [1] : vector<16x16xf32> to vector<16xf32>
    %109 = vector.shape_cast %108 : vector<16xf32> to vector<16x1xf32>
    %110 = vector.broadcast %109 : vector<16x1xf32> to vector<16x16xf32>
    %111 = arith.subf %107, %110 : vector<16x16xf32>
    %112 = math.exp %111 : vector<16x16xf32>
    %cst_46 = arith.constant dense<0.000000e+00> : vector<16xf32>
    %113 = vector.multi_reduction <add>, %112, %cst_46 [1] : vector<16x16xf32> to vector<16xf32>
    %114 = vector.shape_cast %113 : vector<16xf32> to vector<16x1xf32>
    %115 = vector.broadcast %114 : vector<16x1xf32> to vector<16x16xf32>
    %116 = arith.divf %112, %115 : vector<16x16xf32>
    %117 = vector.extract_strided_slice %73 {offsets = [0, 16], sizes = [16, 8], strides = [1, 1]} : vector<16x32xf32> to vector<16x8xf32>
    %cst_47 = arith.constant dense<0.000000e+00> : vector<16x8xf32>
    %118 = tpu.matmul %116, %117, %cst_47 {dimension_numbers = #tpu.dot_dimension_numbers<[1], [0], [0], [1], [0, 0, 1, 1], [], []>} : vector<16x16xf32>, vector<16x8xf32>, vector<16x8xf32> -> vector<16x8xf32>
    %119 = vector.extract_strided_slice %71 {offsets = [0, 24], sizes = [16, 8], strides = [1, 1]} : vector<16x32xf32> to vector<16x8xf32>
    %120 = vector.extract_strided_slice %72 {offsets = [0, 24], sizes = [16, 8], strides = [1, 1]} : vector<16x32xf32> to vector<16x8xf32>
    %cst_48 = arith.constant dense<0.000000e+00> : vector<16x16xf32>
    %121 = tpu.matmul %119, %120, %cst_48 {dimension_numbers = #tpu.dot_dimension_numbers<[1], [1], [0], [0], [0, 0, 1, 0], [], []>} : vector<16x8xf32>, vector<16x8xf32>, vector<16x16xf32> -> vector<16x16xf32>
    %122 = arith.addf %121, %3 : vector<16x16xf32>
    %cst_49 = arith.constant dense<0xFF800000> : vector<16xf32>
    %123 = vector.multi_reduction <maximumf>, %122, %cst_49 [1] : vector<16x16xf32> to vector<16xf32>
    %124 = vector.shape_cast %123 : vector<16xf32> to vector<16x1xf32>
    %125 = vector.broadcast %124 : vector<16x1xf32> to vector<16x16xf32>
    %126 = arith.subf %122, %125 : vector<16x16xf32>
    %127 = math.exp %126 : vector<16x16xf32>
    %cst_50 = arith.constant dense<0.000000e+00> : vector<16xf32>
    %128 = vector.multi_reduction <add>, %127, %cst_50 [1] : vector<16x16xf32> to vector<16xf32>
    %129 = vector.shape_cast %128 : vector<16xf32> to vector<16x1xf32>
    %130 = vector.broadcast %129 : vector<16x1xf32> to vector<16x16xf32>
    %131 = arith.divf %127, %130 : vector<16x16xf32>
    %132 = vector.extract_strided_slice %73 {offsets = [0, 24], sizes = [16, 8], strides = [1, 1]} : vector<16x32xf32> to vector<16x8xf32>
    %cst_51 = arith.constant dense<0.000000e+00> : vector<16x8xf32>
    %133 = tpu.matmul %131, %132, %cst_51 {dimension_numbers = #tpu.dot_dimension_numbers<[1], [0], [0], [1], [0, 0, 1, 1], [], []>} : vector<16x16xf32>, vector<16x8xf32>, vector<16x8xf32> -> vector<16x8xf32>
    %134 = tpu.concatenate %88, %103, %118, %133 in 1 : vector<16x8xf32>, vector<16x8xf32>, vector<16x8xf32>, vector<16x8xf32> -> vector<16x32xf32>
    %cst_52 = arith.constant dense<0.000000e+00> : vector<16x32xf32>
    %135 = tpu.matmul %134, %64, %cst_52 {dimension_numbers = #tpu.dot_dimension_numbers<[1], [0], [0], [1], [0, 0, 1, 1], [], []>} : vector<16x32xf32>, vector<32x32xf32>, vector<16x32xf32> -> vector<16x32xf32>
    %136 = vector.broadcast %65 : vector<1x32xf32> to vector<16x32xf32>
    %137 = arith.addf %135, %136 : vector<16x32xf32>
    %138 = arith.addf %61, %137 : vector<16x32xf32>
    %c9 = arith.constant 9 : index
    %c0_53 = arith.constant 0 : index
    %139 = vector.load %arg7[%c9, %c0_53] : memref<32x128xf32, #tpu.memory_space<vmem>>, vector<1x32xf32>
    %c10 = arith.constant 10 : index
    %c0_54 = arith.constant 0 : index
    %140 = vector.load %arg7[%c10, %c0_54] : memref<32x128xf32, #tpu.memory_space<vmem>>, vector<1x32xf32>
    %cst_55 = arith.constant dense<0.000000e+00> : vector<16xf32>
    %141 = vector.multi_reduction <add>, %138, %cst_55 [1] : vector<16x32xf32> to vector<16xf32>
    %142 = vector.shape_cast %141 : vector<16xf32> to vector<16x1xf32>
    %cst_56 = arith.constant 3.200000e+01 : f32
    %143 = vector.broadcast %cst_56 : f32 to vector<16x1xf32>
    %144 = arith.divf %142, %143 : vector<16x1xf32>
    %145 = vector.broadcast %144 : vector<16x1xf32> to vector<16x32xf32>
    %146 = arith.subf %138, %145 : vector<16x32xf32>
    %147 = arith.mulf %146, %146 : vector<16x32xf32>
    %cst_57 = arith.constant dense<0.000000e+00> : vector<16xf32>
    %148 = vector.multi_reduction <add>, %147, %cst_57 [1] : vector<16x32xf32> to vector<16xf32>
    %149 = vector.shape_cast %148 : vector<16xf32> to vector<16x1xf32>
    %cst_58 = arith.constant 3.200000e+01 : f32
    %150 = vector.broadcast %cst_58 : f32 to vector<16x1xf32>
    %151 = arith.divf %149, %150 : vector<16x1xf32>
    %152 = vector.broadcast %144 : vector<16x1xf32> to vector<16x32xf32>
    %153 = arith.subf %138, %152 : vector<16x32xf32>
    %cst_59 = arith.constant 9.99999974E-6 : f32
    %154 = vector.broadcast %cst_59 : f32 to vector<16x1xf32>
    %155 = arith.addf %151, %154 : vector<16x1xf32>
    %156 = math.rsqrt %155 : vector<16x1xf32>
    %157 = vector.broadcast %156 : vector<16x1xf32> to vector<16x32xf32>
    %158 = arith.mulf %153, %157 : vector<16x32xf32>
    %159 = vector.broadcast %139 : vector<1x32xf32> to vector<16x32xf32>
    %160 = arith.mulf %158, %159 : vector<16x32xf32>
    %161 = vector.broadcast %140 : vector<1x32xf32> to vector<16x32xf32>
    %162 = arith.addf %160, %161 : vector<16x32xf32>
    %c192 = arith.constant 192 : index
    %c0_60 = arith.constant 0 : index
    %163 = vector.load %arg6[%c192, %c0_60] : memref<544x128xf32, #tpu.memory_space<vmem>>, vector<32x64xf32>
    %cst_61 = arith.constant dense<0.000000e+00> : vector<16x64xf32>
    %164 = tpu.matmul %162, %163, %cst_61 {dimension_numbers = #tpu.dot_dimension_numbers<[1], [0], [0], [1], [0, 0, 1, 1], [], []>} : vector<16x32xf32>, vector<32x64xf32>, vector<16x64xf32> -> vector<16x64xf32>
    %c7 = arith.constant 7 : index
    %c0_62 = arith.constant 0 : index
    %165 = vector.load %arg7[%c7, %c0_62] : memref<32x128xf32, #tpu.memory_space<vmem>>, vector<1x64xf32>
    %166 = vector.broadcast %165 : vector<1x64xf32> to vector<16x64xf32>
    %167 = arith.addf %164, %166 : vector<16x64xf32>
    %cst_63 = arith.constant 0.000000e+00 : f32
    %168 = vector.broadcast %cst_63 : f32 to vector<16x64xf32>
    %169 = arith.maximumf %167, %168 : vector<16x64xf32>
    %c224 = arith.constant 224 : index
    %c0_64 = arith.constant 0 : index
    %170 = vector.load %arg6[%c224, %c0_64] : memref<544x128xf32, #tpu.memory_space<vmem>>, vector<64x32xf32>
    %cst_65 = arith.constant dense<0.000000e+00> : vector<16x32xf32>
    %171 = tpu.matmul %169, %170, %cst_65 {dimension_numbers = #tpu.dot_dimension_numbers<[1], [0], [0], [1], [0, 0, 1, 1], [], []>} : vector<16x64xf32>, vector<64x32xf32>, vector<16x32xf32> -> vector<16x32xf32>
    %c8 = arith.constant 8 : index
    %c0_66 = arith.constant 0 : index
    %172 = vector.load %arg7[%c8, %c0_66] : memref<32x128xf32, #tpu.memory_space<vmem>>, vector<1x32xf32>
    %173 = vector.broadcast %172 : vector<1x32xf32> to vector<16x32xf32>
    %174 = arith.addf %171, %173 : vector<16x32xf32>
    %175 = arith.addf %162, %174 : vector<16x32xf32>
    %c11 = arith.constant 11 : index
    %c0_67 = arith.constant 0 : index
    %176 = vector.load %arg7[%c11, %c0_67] : memref<32x128xf32, #tpu.memory_space<vmem>>, vector<1x32xf32>
    %c12 = arith.constant 12 : index
    %c0_68 = arith.constant 0 : index
    %177 = vector.load %arg7[%c12, %c0_68] : memref<32x128xf32, #tpu.memory_space<vmem>>, vector<1x32xf32>
    %cst_69 = arith.constant dense<0.000000e+00> : vector<16xf32>
    %178 = vector.multi_reduction <add>, %175, %cst_69 [1] : vector<16x32xf32> to vector<16xf32>
    %179 = vector.shape_cast %178 : vector<16xf32> to vector<16x1xf32>
    %cst_70 = arith.constant 3.200000e+01 : f32
    %180 = vector.broadcast %cst_70 : f32 to vector<16x1xf32>
    %181 = arith.divf %179, %180 : vector<16x1xf32>
    %182 = vector.broadcast %181 : vector<16x1xf32> to vector<16x32xf32>
    %183 = arith.subf %175, %182 : vector<16x32xf32>
    %184 = arith.mulf %183, %183 : vector<16x32xf32>
    %cst_71 = arith.constant dense<0.000000e+00> : vector<16xf32>
    %185 = vector.multi_reduction <add>, %184, %cst_71 [1] : vector<16x32xf32> to vector<16xf32>
    %186 = vector.shape_cast %185 : vector<16xf32> to vector<16x1xf32>
    %cst_72 = arith.constant 3.200000e+01 : f32
    %187 = vector.broadcast %cst_72 : f32 to vector<16x1xf32>
    %188 = arith.divf %186, %187 : vector<16x1xf32>
    %189 = vector.broadcast %181 : vector<16x1xf32> to vector<16x32xf32>
    %190 = arith.subf %175, %189 : vector<16x32xf32>
    %cst_73 = arith.constant 9.99999974E-6 : f32
    %191 = vector.broadcast %cst_73 : f32 to vector<16x1xf32>
    %192 = arith.addf %188, %191 : vector<16x1xf32>
    %193 = math.rsqrt %192 : vector<16x1xf32>
    %194 = vector.broadcast %193 : vector<16x1xf32> to vector<16x32xf32>
    %195 = arith.mulf %190, %194 : vector<16x32xf32>
    %196 = vector.broadcast %176 : vector<1x32xf32> to vector<16x32xf32>
    %197 = arith.mulf %195, %196 : vector<16x32xf32>
    %198 = vector.broadcast %177 : vector<1x32xf32> to vector<16x32xf32>
    %199 = arith.addf %197, %198 : vector<16x32xf32>
    %c0_74 = arith.constant 0 : index
    %c0_75 = arith.constant 0 : index
    %c0_76 = arith.constant 0 : index
    %200 = vector.load %arg3[%c0_74, %c0_75, %c0_76] : memref<2x1x32xf32, #tpu.memory_space<vmem>>, vector<2x1x32xf32>
    %201 = vector.shape_cast %200 : vector<2x1x32xf32> to vector<2x32xf32>
    %c448 = arith.constant 448 : index
    %c0_77 = arith.constant 0 : index
    %202 = vector.load %arg6[%c448, %c0_77] : memref<544x128xf32, #tpu.memory_space<vmem>>, vector<32x32xf32>
    %cst_78 = arith.constant dense<0.000000e+00> : vector<2x32xf32>
    %203 = tpu.matmul %201, %202, %cst_78 {dimension_numbers = #tpu.dot_dimension_numbers<[1], [0], [0], [1], [0, 0, 1, 1], [], []>} : vector<2x32xf32>, vector<32x32xf32>, vector<2x32xf32> -> vector<2x32xf32>
    %c13 = arith.constant 13 : index
    %c0_79 = arith.constant 0 : index
    %204 = vector.load %arg7[%c13, %c0_79] : memref<32x128xf32, #tpu.memory_space<vmem>>, vector<1x32xf32>
    %205 = vector.broadcast %204 : vector<1x32xf32> to vector<2x32xf32>
    %206 = arith.addf %203, %205 : vector<2x32xf32>
    %cst_80 = arith.constant 0.000000e+00 : f32
    %207 = vector.broadcast %cst_80 : f32 to vector<2x32xf32>
    %208 = arith.maximumf %206, %207 : vector<2x32xf32>
    %c480 = arith.constant 480 : index
    %c0_81 = arith.constant 0 : index
    %209 = vector.load %arg6[%c480, %c0_81] : memref<544x128xf32, #tpu.memory_space<vmem>>, vector<32x32xf32>
    %cst_82 = arith.constant dense<0.000000e+00> : vector<2x32xf32>
    %210 = tpu.matmul %208, %209, %cst_82 {dimension_numbers = #tpu.dot_dimension_numbers<[1], [0], [0], [1], [0, 0, 1, 1], [], []>} : vector<2x32xf32>, vector<32x32xf32>, vector<2x32xf32> -> vector<2x32xf32>
    %c14 = arith.constant 14 : index
    %c0_83 = arith.constant 0 : index
    %211 = vector.load %arg7[%c14, %c0_83] : memref<32x128xf32, #tpu.memory_space<vmem>>, vector<1x32xf32>
    %212 = vector.broadcast %211 : vector<1x32xf32> to vector<2x32xf32>
    %213 = arith.addf %210, %212 : vector<2x32xf32>
    %214 = vector.extract_strided_slice %213 {offsets = [0, 0], sizes = [1, 32], strides = [1, 1]} : vector<2x32xf32> to vector<1x32xf32>
    %215 = vector.shape_cast %214 : vector<1x32xf32> to vector<1x32xf32>
    %216 = vector.broadcast %215 : vector<1x32xf32> to vector<8x32xf32>
    %217 = vector.extract_strided_slice %213 {offsets = [1, 0], sizes = [1, 32], strides = [1, 1]} : vector<2x32xf32> to vector<1x32xf32>
    %218 = vector.shape_cast %217 : vector<1x32xf32> to vector<1x32xf32>
    %219 = vector.broadcast %218 : vector<1x32xf32> to vector<8x32xf32>
    %220 = tpu.concatenate %216, %219 in 0 : vector<8x32xf32>, vector<8x32xf32> -> vector<16x32xf32>
    %221 = arith.mulf %2, %220 : vector<16x32xf32>
    %222 = arith.addf %199, %221 : vector<16x32xf32>
    %c15 = arith.constant 15 : index
    %c0_84 = arith.constant 0 : index
    %223 = vector.load %arg7[%c15, %c0_84] : memref<32x128xf32, #tpu.memory_space<vmem>>, vector<1x32xf32>
    %c16 = arith.constant 16 : index
    %c0_85 = arith.constant 0 : index
    %224 = vector.load %arg7[%c16, %c0_85] : memref<32x128xf32, #tpu.memory_space<vmem>>, vector<1x32xf32>
    %cst_86 = arith.constant dense<0.000000e+00> : vector<16xf32>
    %225 = vector.multi_reduction <add>, %222, %cst_86 [1] : vector<16x32xf32> to vector<16xf32>
    %226 = vector.shape_cast %225 : vector<16xf32> to vector<16x1xf32>
    %cst_87 = arith.constant 3.200000e+01 : f32
    %227 = vector.broadcast %cst_87 : f32 to vector<16x1xf32>
    %228 = arith.divf %226, %227 : vector<16x1xf32>
    %229 = vector.broadcast %228 : vector<16x1xf32> to vector<16x32xf32>
    %230 = arith.subf %222, %229 : vector<16x32xf32>
    %231 = arith.mulf %230, %230 : vector<16x32xf32>
    %cst_88 = arith.constant dense<0.000000e+00> : vector<16xf32>
    %232 = vector.multi_reduction <add>, %231, %cst_88 [1] : vector<16x32xf32> to vector<16xf32>
    %233 = vector.shape_cast %232 : vector<16xf32> to vector<16x1xf32>
    %cst_89 = arith.constant 3.200000e+01 : f32
    %234 = vector.broadcast %cst_89 : f32 to vector<16x1xf32>
    %235 = arith.divf %233, %234 : vector<16x1xf32>
    %236 = vector.broadcast %228 : vector<16x1xf32> to vector<16x32xf32>
    %237 = arith.subf %222, %236 : vector<16x32xf32>
    %cst_90 = arith.constant 9.99999974E-6 : f32
    %238 = vector.broadcast %cst_90 : f32 to vector<16x1xf32>
    %239 = arith.addf %235, %238 : vector<16x1xf32>
    %240 = math.rsqrt %239 : vector<16x1xf32>
    %241 = vector.broadcast %240 : vector<16x1xf32> to vector<16x32xf32>
    %242 = arith.mulf %237, %241 : vector<16x32xf32>
    %243 = vector.broadcast %223 : vector<1x32xf32> to vector<16x32xf32>
    %244 = arith.mulf %242, %243 : vector<16x32xf32>
    %245 = vector.broadcast %224 : vector<1x32xf32> to vector<16x32xf32>
    %246 = arith.addf %244, %245 : vector<16x32xf32>
    %cst_91 = arith.constant 5.000000e-01 : f32
    %247 = vector.broadcast %cst_91 : f32 to vector<16x32xf32>
    %248 = arith.mulf %247, %246 : vector<16x32xf32>
    %cst_92 = arith.constant 4.471500e-02 : f32
    %249 = vector.broadcast %cst_92 : f32 to vector<16x32xf32>
    %250 = arith.mulf %249, %246 : vector<16x32xf32>
    %251 = arith.mulf %250, %246 : vector<16x32xf32>
    %252 = arith.mulf %251, %246 : vector<16x32xf32>
    %253 = arith.addf %246, %252 : vector<16x32xf32>
    %cst_93 = arith.constant 0.797884583 : f32
    %254 = vector.broadcast %cst_93 : f32 to vector<16x32xf32>
    %255 = arith.mulf %254, %253 : vector<16x32xf32>
    %256 = math.tanh %255 : vector<16x32xf32>
    %cst_94 = arith.constant 1.000000e+00 : f32
    %257 = vector.broadcast %cst_94 : f32 to vector<16x32xf32>
    %258 = arith.addf %257, %256 : vector<16x32xf32>
    %259 = arith.mulf %248, %258 : vector<16x32xf32>
    %c288 = arith.constant 288 : index
    %c0_95 = arith.constant 0 : index
    %260 = vector.load %arg6[%c288, %c0_95] : memref<544x128xf32, #tpu.memory_space<vmem>>, vector<32x96xf32>
    %c17 = arith.constant 17 : index
    %c0_96 = arith.constant 0 : index
    %261 = vector.load %arg7[%c17, %c0_96] : memref<32x128xf32, #tpu.memory_space<vmem>>, vector<1x96xf32>
    %c320 = arith.constant 320 : index
    %c0_97 = arith.constant 0 : index
    %262 = vector.load %arg6[%c320, %c0_97] : memref<544x128xf32, #tpu.memory_space<vmem>>, vector<32x32xf32>
    %c18 = arith.constant 18 : index
    %c0_98 = arith.constant 0 : index
    %263 = vector.load %arg7[%c18, %c0_98] : memref<32x128xf32, #tpu.memory_space<vmem>>, vector<1x32xf32>
    %cst_99 = arith.constant dense<0.000000e+00> : vector<16x96xf32>
    %264 = tpu.matmul %259, %260, %cst_99 {dimension_numbers = #tpu.dot_dimension_numbers<[1], [0], [0], [1], [0, 0, 1, 1], [], []>} : vector<16x32xf32>, vector<32x96xf32>, vector<16x96xf32> -> vector<16x96xf32>
    %265 = vector.broadcast %261 : vector<1x96xf32> to vector<16x96xf32>
    %266 = arith.addf %264, %265 : vector<16x96xf32>
    %267 = vector.extract_strided_slice %266 {offsets = [0, 0], sizes = [16, 32], strides = [1, 1]} : vector<16x96xf32> to vector<16x32xf32>
    %cst_100 = arith.constant 0.353553385 : f32
    %268 = vector.broadcast %cst_100 : f32 to vector<16x32xf32>
    %269 = arith.mulf %267, %268 : vector<16x32xf32>
    %270 = vector.extract_strided_slice %266 {offsets = [0, 32], sizes = [16, 32], strides = [1, 1]} : vector<16x96xf32> to vector<16x32xf32>
    %271 = vector.extract_strided_slice %266 {offsets = [0, 64], sizes = [16, 32], strides = [1, 1]} : vector<16x96xf32> to vector<16x32xf32>
    %272 = vector.extract_strided_slice %269 {offsets = [0, 0], sizes = [16, 8], strides = [1, 1]} : vector<16x32xf32> to vector<16x8xf32>
    %273 = vector.extract_strided_slice %270 {offsets = [0, 0], sizes = [16, 8], strides = [1, 1]} : vector<16x32xf32> to vector<16x8xf32>
    %cst_101 = arith.constant dense<0.000000e+00> : vector<16x16xf32>
    %274 = tpu.matmul %272, %273, %cst_101 {dimension_numbers = #tpu.dot_dimension_numbers<[1], [1], [0], [0], [0, 0, 1, 0], [], []>} : vector<16x8xf32>, vector<16x8xf32>, vector<16x16xf32> -> vector<16x16xf32>
    %275 = arith.addf %274, %3 : vector<16x16xf32>
    %cst_102 = arith.constant dense<0xFF800000> : vector<16xf32>
    %276 = vector.multi_reduction <maximumf>, %275, %cst_102 [1] : vector<16x16xf32> to vector<16xf32>
    %277 = vector.shape_cast %276 : vector<16xf32> to vector<16x1xf32>
    %278 = vector.broadcast %277 : vector<16x1xf32> to vector<16x16xf32>
    %279 = arith.subf %275, %278 : vector<16x16xf32>
    %280 = math.exp %279 : vector<16x16xf32>
    %cst_103 = arith.constant dense<0.000000e+00> : vector<16xf32>
    %281 = vector.multi_reduction <add>, %280, %cst_103 [1] : vector<16x16xf32> to vector<16xf32>
    %282 = vector.shape_cast %281 : vector<16xf32> to vector<16x1xf32>
    %283 = vector.broadcast %282 : vector<16x1xf32> to vector<16x16xf32>
    %284 = arith.divf %280, %283 : vector<16x16xf32>
    %285 = vector.extract_strided_slice %271 {offsets = [0, 0], sizes = [16, 8], strides = [1, 1]} : vector<16x32xf32> to vector<16x8xf32>
    %cst_104 = arith.constant dense<0.000000e+00> : vector<16x8xf32>
    %286 = tpu.matmul %284, %285, %cst_104 {dimension_numbers = #tpu.dot_dimension_numbers<[1], [0], [0], [1], [0, 0, 1, 1], [], []>} : vector<16x16xf32>, vector<16x8xf32>, vector<16x8xf32> -> vector<16x8xf32>
    %287 = vector.extract_strided_slice %269 {offsets = [0, 8], sizes = [16, 8], strides = [1, 1]} : vector<16x32xf32> to vector<16x8xf32>
    %288 = vector.extract_strided_slice %270 {offsets = [0, 8], sizes = [16, 8], strides = [1, 1]} : vector<16x32xf32> to vector<16x8xf32>
    %cst_105 = arith.constant dense<0.000000e+00> : vector<16x16xf32>
    %289 = tpu.matmul %287, %288, %cst_105 {dimension_numbers = #tpu.dot_dimension_numbers<[1], [1], [0], [0], [0, 0, 1, 0], [], []>} : vector<16x8xf32>, vector<16x8xf32>, vector<16x16xf32> -> vector<16x16xf32>
    %290 = arith.addf %289, %3 : vector<16x16xf32>
    %cst_106 = arith.constant dense<0xFF800000> : vector<16xf32>
    %291 = vector.multi_reduction <maximumf>, %290, %cst_106 [1] : vector<16x16xf32> to vector<16xf32>
    %292 = vector.shape_cast %291 : vector<16xf32> to vector<16x1xf32>
    %293 = vector.broadcast %292 : vector<16x1xf32> to vector<16x16xf32>
    %294 = arith.subf %290, %293 : vector<16x16xf32>
    %295 = math.exp %294 : vector<16x16xf32>
    %cst_107 = arith.constant dense<0.000000e+00> : vector<16xf32>
    %296 = vector.multi_reduction <add>, %295, %cst_107 [1] : vector<16x16xf32> to vector<16xf32>
    %297 = vector.shape_cast %296 : vector<16xf32> to vector<16x1xf32>
    %298 = vector.broadcast %297 : vector<16x1xf32> to vector<16x16xf32>
    %299 = arith.divf %295, %298 : vector<16x16xf32>
    %300 = vector.extract_strided_slice %271 {offsets = [0, 8], sizes = [16, 8], strides = [1, 1]} : vector<16x32xf32> to vector<16x8xf32>
    %cst_108 = arith.constant dense<0.000000e+00> : vector<16x8xf32>
    %301 = tpu.matmul %299, %300, %cst_108 {dimension_numbers = #tpu.dot_dimension_numbers<[1], [0], [0], [1], [0, 0, 1, 1], [], []>} : vector<16x16xf32>, vector<16x8xf32>, vector<16x8xf32> -> vector<16x8xf32>
    %302 = vector.extract_strided_slice %269 {offsets = [0, 16], sizes = [16, 8], strides = [1, 1]} : vector<16x32xf32> to vector<16x8xf32>
    %303 = vector.extract_strided_slice %270 {offsets = [0, 16], sizes = [16, 8], strides = [1, 1]} : vector<16x32xf32> to vector<16x8xf32>
    %cst_109 = arith.constant dense<0.000000e+00> : vector<16x16xf32>
    %304 = tpu.matmul %302, %303, %cst_109 {dimension_numbers = #tpu.dot_dimension_numbers<[1], [1], [0], [0], [0, 0, 1, 0], [], []>} : vector<16x8xf32>, vector<16x8xf32>, vector<16x16xf32> -> vector<16x16xf32>
    %305 = arith.addf %304, %3 : vector<16x16xf32>
    %cst_110 = arith.constant dense<0xFF800000> : vector<16xf32>
    %306 = vector.multi_reduction <maximumf>, %305, %cst_110 [1] : vector<16x16xf32> to vector<16xf32>
    %307 = vector.shape_cast %306 : vector<16xf32> to vector<16x1xf32>
    %308 = vector.broadcast %307 : vector<16x1xf32> to vector<16x16xf32>
    %309 = arith.subf %305, %308 : vector<16x16xf32>
    %310 = math.exp %309 : vector<16x16xf32>
    %cst_111 = arith.constant dense<0.000000e+00> : vector<16xf32>
    %311 = vector.multi_reduction <add>, %310, %cst_111 [1] : vector<16x16xf32> to vector<16xf32>
    %312 = vector.shape_cast %311 : vector<16xf32> to vector<16x1xf32>
    %313 = vector.broadcast %312 : vector<16x1xf32> to vector<16x16xf32>
    %314 = arith.divf %310, %313 : vector<16x16xf32>
    %315 = vector.extract_strided_slice %271 {offsets = [0, 16], sizes = [16, 8], strides = [1, 1]} : vector<16x32xf32> to vector<16x8xf32>
    %cst_112 = arith.constant dense<0.000000e+00> : vector<16x8xf32>
    %316 = tpu.matmul %314, %315, %cst_112 {dimension_numbers = #tpu.dot_dimension_numbers<[1], [0], [0], [1], [0, 0, 1, 1], [], []>} : vector<16x16xf32>, vector<16x8xf32>, vector<16x8xf32> -> vector<16x8xf32>
    %317 = vector.extract_strided_slice %269 {offsets = [0, 24], sizes = [16, 8], strides = [1, 1]} : vector<16x32xf32> to vector<16x8xf32>
    %318 = vector.extract_strided_slice %270 {offsets = [0, 24], sizes = [16, 8], strides = [1, 1]} : vector<16x32xf32> to vector<16x8xf32>
    %cst_113 = arith.constant dense<0.000000e+00> : vector<16x16xf32>
    %319 = tpu.matmul %317, %318, %cst_113 {dimension_numbers = #tpu.dot_dimension_numbers<[1], [1], [0], [0], [0, 0, 1, 0], [], []>} : vector<16x8xf32>, vector<16x8xf32>, vector<16x16xf32> -> vector<16x16xf32>
    %320 = arith.addf %319, %3 : vector<16x16xf32>
    %cst_114 = arith.constant dense<0xFF800000> : vector<16xf32>
    %321 = vector.multi_reduction <maximumf>, %320, %cst_114 [1] : vector<16x16xf32> to vector<16xf32>
    %322 = vector.shape_cast %321 : vector<16xf32> to vector<16x1xf32>
    %323 = vector.broadcast %322 : vector<16x1xf32> to vector<16x16xf32>
    %324 = arith.subf %320, %323 : vector<16x16xf32>
    %325 = math.exp %324 : vector<16x16xf32>
    %cst_115 = arith.constant dense<0.000000e+00> : vector<16xf32>
    %326 = vector.multi_reduction <add>, %325, %cst_115 [1] : vector<16x16xf32> to vector<16xf32>
    %327 = vector.shape_cast %326 : vector<16xf32> to vector<16x1xf32>
    %328 = vector.broadcast %327 : vector<16x1xf32> to vector<16x16xf32>
    %329 = arith.divf %325, %328 : vector<16x16xf32>
    %330 = vector.extract_strided_slice %271 {offsets = [0, 24], sizes = [16, 8], strides = [1, 1]} : vector<16x32xf32> to vector<16x8xf32>
    %cst_116 = arith.constant dense<0.000000e+00> : vector<16x8xf32>
    %331 = tpu.matmul %329, %330, %cst_116 {dimension_numbers = #tpu.dot_dimension_numbers<[1], [0], [0], [1], [0, 0, 1, 1], [], []>} : vector<16x16xf32>, vector<16x8xf32>, vector<16x8xf32> -> vector<16x8xf32>
    %332 = tpu.concatenate %286, %301, %316, %331 in 1 : vector<16x8xf32>, vector<16x8xf32>, vector<16x8xf32>, vector<16x8xf32> -> vector<16x32xf32>
    %cst_117 = arith.constant dense<0.000000e+00> : vector<16x32xf32>
    %333 = tpu.matmul %332, %262, %cst_117 {dimension_numbers = #tpu.dot_dimension_numbers<[1], [0], [0], [1], [0, 0, 1, 1], [], []>} : vector<16x32xf32>, vector<32x32xf32>, vector<16x32xf32> -> vector<16x32xf32>
    %334 = vector.broadcast %263 : vector<1x32xf32> to vector<16x32xf32>
    %335 = arith.addf %333, %334 : vector<16x32xf32>
    %336 = arith.addf %259, %335 : vector<16x32xf32>
    %c21 = arith.constant 21 : index
    %c0_118 = arith.constant 0 : index
    %337 = vector.load %arg7[%c21, %c0_118] : memref<32x128xf32, #tpu.memory_space<vmem>>, vector<1x32xf32>
    %c22 = arith.constant 22 : index
    %c0_119 = arith.constant 0 : index
    %338 = vector.load %arg7[%c22, %c0_119] : memref<32x128xf32, #tpu.memory_space<vmem>>, vector<1x32xf32>
    %cst_120 = arith.constant dense<0.000000e+00> : vector<16xf32>
    %339 = vector.multi_reduction <add>, %336, %cst_120 [1] : vector<16x32xf32> to vector<16xf32>
    %340 = vector.shape_cast %339 : vector<16xf32> to vector<16x1xf32>
    %cst_121 = arith.constant 3.200000e+01 : f32
    %341 = vector.broadcast %cst_121 : f32 to vector<16x1xf32>
    %342 = arith.divf %340, %341 : vector<16x1xf32>
    %343 = vector.broadcast %342 : vector<16x1xf32> to vector<16x32xf32>
    %344 = arith.subf %336, %343 : vector<16x32xf32>
    %345 = arith.mulf %344, %344 : vector<16x32xf32>
    %cst_122 = arith.constant dense<0.000000e+00> : vector<16xf32>
    %346 = vector.multi_reduction <add>, %345, %cst_122 [1] : vector<16x32xf32> to vector<16xf32>
    %347 = vector.shape_cast %346 : vector<16xf32> to vector<16x1xf32>
    %cst_123 = arith.constant 3.200000e+01 : f32
    %348 = vector.broadcast %cst_123 : f32 to vector<16x1xf32>
    %349 = arith.divf %347, %348 : vector<16x1xf32>
    %350 = vector.broadcast %342 : vector<16x1xf32> to vector<16x32xf32>
    %351 = arith.subf %336, %350 : vector<16x32xf32>
    %cst_124 = arith.constant 9.99999974E-6 : f32
    %352 = vector.broadcast %cst_124 : f32 to vector<16x1xf32>
    %353 = arith.addf %349, %352 : vector<16x1xf32>
    %354 = math.rsqrt %353 : vector<16x1xf32>
    %355 = vector.broadcast %354 : vector<16x1xf32> to vector<16x32xf32>
    %356 = arith.mulf %351, %355 : vector<16x32xf32>
    %357 = vector.broadcast %337 : vector<1x32xf32> to vector<16x32xf32>
    %358 = arith.mulf %356, %357 : vector<16x32xf32>
    %359 = vector.broadcast %338 : vector<1x32xf32> to vector<16x32xf32>
    %360 = arith.addf %358, %359 : vector<16x32xf32>
    %c352 = arith.constant 352 : index
    %c0_125 = arith.constant 0 : index
    %361 = vector.load %arg6[%c352, %c0_125] : memref<544x128xf32, #tpu.memory_space<vmem>>, vector<32x64xf32>
    %cst_126 = arith.constant dense<0.000000e+00> : vector<16x64xf32>
    %362 = tpu.matmul %360, %361, %cst_126 {dimension_numbers = #tpu.dot_dimension_numbers<[1], [0], [0], [1], [0, 0, 1, 1], [], []>} : vector<16x32xf32>, vector<32x64xf32>, vector<16x64xf32> -> vector<16x64xf32>
    %c19 = arith.constant 19 : index
    %c0_127 = arith.constant 0 : index
    %363 = vector.load %arg7[%c19, %c0_127] : memref<32x128xf32, #tpu.memory_space<vmem>>, vector<1x64xf32>
    %364 = vector.broadcast %363 : vector<1x64xf32> to vector<16x64xf32>
    %365 = arith.addf %362, %364 : vector<16x64xf32>
    %cst_128 = arith.constant 0.000000e+00 : f32
    %366 = vector.broadcast %cst_128 : f32 to vector<16x64xf32>
    %367 = arith.maximumf %365, %366 : vector<16x64xf32>
    %c384 = arith.constant 384 : index
    %c0_129 = arith.constant 0 : index
    %368 = vector.load %arg6[%c384, %c0_129] : memref<544x128xf32, #tpu.memory_space<vmem>>, vector<64x32xf32>
    %cst_130 = arith.constant dense<0.000000e+00> : vector<16x32xf32>
    %369 = tpu.matmul %367, %368, %cst_130 {dimension_numbers = #tpu.dot_dimension_numbers<[1], [0], [0], [1], [0, 0, 1, 1], [], []>} : vector<16x64xf32>, vector<64x32xf32>, vector<16x32xf32> -> vector<16x32xf32>
    %c20 = arith.constant 20 : index
    %c0_131 = arith.constant 0 : index
    %370 = vector.load %arg7[%c20, %c0_131] : memref<32x128xf32, #tpu.memory_space<vmem>>, vector<1x32xf32>
    %371 = vector.broadcast %370 : vector<1x32xf32> to vector<16x32xf32>
    %372 = arith.addf %369, %371 : vector<16x32xf32>
    %373 = arith.addf %360, %372 : vector<16x32xf32>
    %c23 = arith.constant 23 : index
    %c0_132 = arith.constant 0 : index
    %374 = vector.load %arg7[%c23, %c0_132] : memref<32x128xf32, #tpu.memory_space<vmem>>, vector<1x32xf32>
    %c24 = arith.constant 24 : index
    %c0_133 = arith.constant 0 : index
    %375 = vector.load %arg7[%c24, %c0_133] : memref<32x128xf32, #tpu.memory_space<vmem>>, vector<1x32xf32>
    %cst_134 = arith.constant dense<0.000000e+00> : vector<16xf32>
    %376 = vector.multi_reduction <add>, %373, %cst_134 [1] : vector<16x32xf32> to vector<16xf32>
    %377 = vector.shape_cast %376 : vector<16xf32> to vector<16x1xf32>
    %cst_135 = arith.constant 3.200000e+01 : f32
    %378 = vector.broadcast %cst_135 : f32 to vector<16x1xf32>
    %379 = arith.divf %377, %378 : vector<16x1xf32>
    %380 = vector.broadcast %379 : vector<16x1xf32> to vector<16x32xf32>
    %381 = arith.subf %373, %380 : vector<16x32xf32>
    %382 = arith.mulf %381, %381 : vector<16x32xf32>
    %cst_136 = arith.constant dense<0.000000e+00> : vector<16xf32>
    %383 = vector.multi_reduction <add>, %382, %cst_136 [1] : vector<16x32xf32> to vector<16xf32>
    %384 = vector.shape_cast %383 : vector<16xf32> to vector<16x1xf32>
    %cst_137 = arith.constant 3.200000e+01 : f32
    %385 = vector.broadcast %cst_137 : f32 to vector<16x1xf32>
    %386 = arith.divf %384, %385 : vector<16x1xf32>
    %387 = vector.broadcast %379 : vector<16x1xf32> to vector<16x32xf32>
    %388 = arith.subf %373, %387 : vector<16x32xf32>
    %cst_138 = arith.constant 9.99999974E-6 : f32
    %389 = vector.broadcast %cst_138 : f32 to vector<16x1xf32>
    %390 = arith.addf %386, %389 : vector<16x1xf32>
    %391 = math.rsqrt %390 : vector<16x1xf32>
    %392 = vector.broadcast %391 : vector<16x1xf32> to vector<16x32xf32>
    %393 = arith.mulf %388, %392 : vector<16x32xf32>
    %394 = vector.broadcast %374 : vector<1x32xf32> to vector<16x32xf32>
    %395 = arith.mulf %393, %394 : vector<16x32xf32>
    %396 = vector.broadcast %375 : vector<1x32xf32> to vector<16x32xf32>
    %397 = arith.addf %395, %396 : vector<16x32xf32>
    %c512 = arith.constant 512 : index
    %c0_139 = arith.constant 0 : index
    %398 = vector.load %arg6[%c512, %c0_139] : memref<544x128xf32, #tpu.memory_space<vmem>>, vector<32x32xf32>
    %cst_140 = arith.constant dense<0.000000e+00> : vector<16x32xf32>
    %399 = tpu.matmul %0, %398, %cst_140 {dimension_numbers = #tpu.dot_dimension_numbers<[1], [0], [0], [1], [0, 0, 1, 1], [], []>} : vector<16x32xf32>, vector<32x32xf32>, vector<16x32xf32> -> vector<16x32xf32>
    %c25 = arith.constant 25 : index
    %c0_141 = arith.constant 0 : index
    %400 = vector.load %arg7[%c25, %c0_141] : memref<32x128xf32, #tpu.memory_space<vmem>>, vector<1x32xf32>
    %401 = vector.broadcast %400 : vector<1x32xf32> to vector<16x32xf32>
    %402 = arith.addf %399, %401 : vector<16x32xf32>
    %c26 = arith.constant 26 : index
    %c0_142 = arith.constant 0 : index
    %403 = vector.load %arg7[%c26, %c0_142] : memref<32x128xf32, #tpu.memory_space<vmem>>, vector<1x32xf32>
    %c27 = arith.constant 27 : index
    %c0_143 = arith.constant 0 : index
    %404 = vector.load %arg7[%c27, %c0_143] : memref<32x128xf32, #tpu.memory_space<vmem>>, vector<1x32xf32>
    %cst_144 = arith.constant dense<0.000000e+00> : vector<16xf32>
    %405 = vector.multi_reduction <add>, %402, %cst_144 [1] : vector<16x32xf32> to vector<16xf32>
    %406 = vector.shape_cast %405 : vector<16xf32> to vector<16x1xf32>
    %cst_145 = arith.constant 3.200000e+01 : f32
    %407 = vector.broadcast %cst_145 : f32 to vector<16x1xf32>
    %408 = arith.divf %406, %407 : vector<16x1xf32>
    %409 = vector.broadcast %408 : vector<16x1xf32> to vector<16x32xf32>
    %410 = arith.subf %402, %409 : vector<16x32xf32>
    %411 = arith.mulf %410, %410 : vector<16x32xf32>
    %cst_146 = arith.constant dense<0.000000e+00> : vector<16xf32>
    %412 = vector.multi_reduction <add>, %411, %cst_146 [1] : vector<16x32xf32> to vector<16xf32>
    %413 = vector.shape_cast %412 : vector<16xf32> to vector<16x1xf32>
    %cst_147 = arith.constant 3.200000e+01 : f32
    %414 = vector.broadcast %cst_147 : f32 to vector<16x1xf32>
    %415 = arith.divf %413, %414 : vector<16x1xf32>
    %416 = vector.broadcast %408 : vector<16x1xf32> to vector<16x32xf32>
    %417 = arith.subf %402, %416 : vector<16x32xf32>
    %cst_148 = arith.constant 9.99999974E-6 : f32
    %418 = vector.broadcast %cst_148 : f32 to vector<16x1xf32>
    %419 = arith.addf %415, %418 : vector<16x1xf32>
    %420 = math.rsqrt %419 : vector<16x1xf32>
    %421 = vector.broadcast %420 : vector<16x1xf32> to vector<16x32xf32>
    %422 = arith.mulf %417, %421 : vector<16x32xf32>
    %423 = vector.broadcast %403 : vector<1x32xf32> to vector<16x32xf32>
    %424 = arith.mulf %422, %423 : vector<16x32xf32>
    %425 = vector.broadcast %404 : vector<1x32xf32> to vector<16x32xf32>
    %426 = arith.addf %424, %425 : vector<16x32xf32>
    %427 = arith.addf %426, %397 : vector<16x32xf32>
    %c0_149 = arith.constant 0 : index
    %c0_150 = arith.constant 0 : index
    %428 = vector.load %arg8[%c0_149, %c0_150] : memref<16x32xf32, #tpu.memory_space<vmem>>, vector<16x32xf32>
    tpu.vector_store %arg8[%c0_149, %c0_150], %427 {strides = array<i32>} : memref<16x32xf32, #tpu.memory_space<vmem>>, vector<16x32xf32>,
    return
  }
  func.func @transform_0(%arg0: i32) -> (i32, i32) {
    %c0_i32 = arith.constant 0 : i32
    %c0_i32_0 = arith.constant 0 : i32
    return %arg0, %c0_i32 : i32, i32
  }
  func.func @transform_1(%arg0: i32) -> (i32, i32) {
    %c0_i32 = arith.constant 0 : i32
    %c0_i32_0 = arith.constant 0 : i32
    return %arg0, %c0_i32 : i32, i32
  }
  func.func @transform_2(%arg0: i32) -> (i32, i32, i32) {
    %c0_i32 = arith.constant 0 : i32
    %c0_i32_0 = arith.constant 0 : i32
    %c0_i32_1 = arith.constant 0 : i32
    return %arg0, %c0_i32, %c0_i32_0 : i32, i32, i32
  }
  func.func @transform_3(%arg0: i32) -> (i32, i32) {
    %c0_i32 = arith.constant 0 : i32
    %c0_i32_0 = arith.constant 0 : i32
    %c0_i32_1 = arith.constant 0 : i32
    return %c0_i32, %c0_i32_0 : i32, i32
  }
  func.func @transform_4(%arg0: i32) -> (i32, i32) {
    %c0_i32 = arith.constant 0 : i32
    %c0_i32_0 = arith.constant 0 : i32
    %c0_i32_1 = arith.constant 0 : i32
    return %c0_i32, %c0_i32_0 : i32, i32
  }
  func.func @transform_5(%arg0: i32) -> (i32, i32) {
    %c0_i32 = arith.constant 0 : i32
    %c0_i32_0 = arith.constant 0 : i32
    %c0_i32_1 = arith.constant 0 : i32
    return %c0_i32, %c0_i32_0 : i32, i32
  }
  func.func @transform_6(%arg0: i32) -> (i32, i32) {
    %c0_i32 = arith.constant 0 : i32
    %c0_i32_0 = arith.constant 0 : i32
    %c0_i32_1 = arith.constant 0 : i32
    return %c0_i32, %c0_i32_0 : i32, i32
  }
  func.func @transform_7(%arg0: i32) -> (i32, i32) {
    %c0_i32 = arith.constant 0 : i32
    %c0_i32_0 = arith.constant 0 : i32
    return %arg0, %c0_i32 : i32, i32
  }
}

</mosaic_0001>

<llo_original>
// kernel: _forward.1
$region0: #{_forward.1}
  #allocation0 [shape = 'u32[]', space=smem, size = 0x4, offset = 0x4, fixed_abs, tag = 'smem constant byte address 0x4 - core index']
  #allocation1 [shape = 'u32[72,128]{1,0:T(1,128)}', space=vmem, size = 0x9000, scoped, tag = 'internal scratch']
  %s0 = inlined_call_operand.vmem [shape: f32[16,32], index: 0, kind: input, shape index: {}]
  %s1 = inlined_call_operand.vmem [shape: f32[16,64], index: 1, kind: input, shape index: {}]
  %s2 = inlined_call_operand.vmem [shape: f32[2,1,32], index: 2, kind: input, shape index: {}]
  %s3 = inlined_call_operand.vmem [shape: f32[16,32], index: 3, kind: input, shape index: {}]
  %s4 = inlined_call_operand.vmem [shape: f32[16,16], index: 4, kind: input, shape index: {}]
  %s5 = inlined_call_operand.hbm [shape: f32[544,128], index: 5, kind: input, shape index: {}]
  %s6 = inlined_call_operand.vmem [shape: f32[32,128], index: 6, kind: input, shape index: {}]
  %s7 = inlined_call_operand.hbm [shape: f32[16,32], index: 7, kind: output, shape index: {}]
  %s8 = sld [smem:[#allocation0]]
  $region42: #{_forward.1} parent=0
    _
  %s10 = ssub.s32 1, %s8
  %s11 = scalar_select 0, %s10, %s8
  $region1: #{_forward.1} parent=0
    #allocation2 [shape = 'u8[278528]{0}', space=vmem, size = 0x44000, scoped, tag = 'input window, operand 5, single buffered']
    #allocation3 [shape = 's32[1]{0}', space=sflag, size = 0x4, scoped, tag = 'scoped memory for _forward.1']
    #allocation4 [shape = 's32[1]{0}', space=sflag, size = 0x4, scoped, tag = 'scoped memory for _forward.1']
    #allocation5 [shape = 'u8[8192]{0}', space=vmem, size = 0x2000, scoped, tag = 'output window, operand 0, single buffered']
    %12 = vsyncpa [#allocation3], 0
    %13 = vsyncpa [#allocation4], 0
    // Predicated region
    $region2: #{_forward.1} parent=1 // pred_check
      _
    $region3: #{_forward.1} parent=1 // pred_check_branch
      %15 = sbr.rel (0) target = $region5
    $region4: #{_forward.1} parent=1 // pred_region
      _
    $region5: #{_forward.1} parent=1 // pred_fallthru
      _
    // Predicated region
    $region6: #{_forward.1} parent=1 // pred_check
      _
    $region7: #{_forward.1} parent=1 // pred_check_branch
      %17 = sbr.rel (0) target = $region9
    $region8: #{_forward.1} parent=1 // pred_region
      _
    $region9: #{_forward.1} parent=1 // pred_fallthru
      _
    // Predicated region
    $region10: #{_forward.1} parent=1 // pred_check
      _
    $region11: #{_forward.1} parent=1 // pred_check_branch
      %19 = sbr.rel (0) target = $region13
    $region12: #{_forward.1} parent=1 // pred_region
      _
    $region13: #{_forward.1} parent=1 // pred_fallthru
      _
    // Predicated region
    $region14: #{_forward.1} parent=1 // pred_check
      _
    $region15: #{_forward.1} parent=1 // pred_check_branch
      %21 = sbr.rel (0) target = $region17
    $region16: #{_forward.1} parent=1 // pred_region
      _
    $region17: #{_forward.1} parent=1 // pred_fallthru
      _
    // Predicated region
    $region18: #{_forward.1} parent=1 // pred_check
      _
    $region19: #{_forward.1} parent=1 // pred_check_branch
      %23 = sbr.rel (0) target = $region21
    $region20: #{_forward.1} parent=1 // pred_region
      _
    $region21: #{_forward.1} parent=1 // pred_fallthru
      _
    // Predicated region
    $region22: #{_forward.1} parent=1 // pred_check
      _
    $region23: #{_forward.1} parent=1 // pred_check_branch
      %25 = sbr.rel (0) target = $region25
    $region24: #{_forward.1} parent=1 // pred_region
      %27 = vsyncadd [#allocation3], 0
      %s28 = sshll.u32 %s5, 4
      %s29 = int_to_ptr.hbm [resolvable:$true] %s28
      %s30 = sshll.u32 [#allocation2], 4
      %s31 = int_to_ptr.vmem [resolvable:$true] %s30
      %36 = dma.hbm_to_vmem [thread:$0]  %s29, 8704, %s31, [#allocation3], 128, 128, 8
    $region25: #{_forward.1} parent=1 // pred_fallthru
      _
    // Predicated region
    $region26: #{_forward.1} parent=1 // pred_check
      _
    $region27: #{_forward.1} parent=1 // pred_check_branch
      %38 = sbr.rel (0) target = $region29
    $region28: #{_forward.1} parent=1 // pred_region
      _
    $region29: #{_forward.1} parent=1 // pred_fallthru
      _
    // Predicated region
    $region30: #{_forward.1} parent=1 // pred_check
      _
    $region31: #{_forward.1} parent=1 // pred_check_branch
      %40 = sbr.rel (0) target = $region33
    $region32: #{_forward.1} parent=1 // pred_region
      %42 = dma.done [#allocation3], 8704
    $region33: #{_forward.1} parent=1 // pred_fallthru
      _
    %v43 = vld [vmem:[%s0] sm:$0xff]
    %v44 = vld [vmem:[%s0 + $0x8] sm:$0xff]
    %v45 = vld [vmem:[%s1] sm:$0xff]
    %v46 = vld [vmem:[%s1 + $0x8] sm:$0xff]
    %v47 = vld [vmem:[%s3] sm:$0xff]
    %v48 = vld [vmem:[%s3 + $0x8] sm:$0xff]
    %v49 = vld [vmem:[%s4] sm:$0xff]
    %v50 = vld [vmem:[%s4 + $0x8] sm:$0xff]
    %v51 = vld [vmem:[#allocation2] sm:$0xff]
    %v52 = vld [vmem:[#allocation2 + $0x8] sm:$0xff]
    %v53 = vld [vmem:[#allocation2 + $0x10] sm:$0xff]
    %v54 = vld [vmem:[#allocation2 + $0x18] sm:$0xff]
    %v55 = vld [vmem:[#allocation2 + $0x20] sm:$0xff]
    %v56 = vld [vmem:[#allocation2 + $0x28] sm:$0xff]
    %v57 = vld [vmem:[#allocation2 + $0x30] sm:$0xff]
    %v58 = vld [vmem:[#allocation2 + $0x38] sm:$0xff]
    %v59 = vld [vmem:[%s6] sm:$0x1]
    %v60 = vperm.slane %v59, 0
    %vm61 = vcmask 523264
    %v63 = vsel %vm61, %v45, 0
    %v66 = vsel %vm61, %v46, 0
    %68 = vmatpush.msra.mxu0 0.0
    %69 = vmatpush.msra.mxu0 0.0
    %70 = vmatpush.msra.mxu0 0.0
    %71 = vmatpush.msra.mxu0 0.0
    %72 = vmatpush.msra.mxu0 0.0
    %73 = vmatpush.msra.mxu0 0.0
    %74 = vmatpush.msra.mxu0 0.0
    %75 = vmatpush.msra.mxu0 0.0
    %76 = vmatpush.msra.mxu0 %v58
    %77 = vmatpush.msra.mxu0 %v57
    %78 = vmatpush.msra.mxu0 %v56
    %79 = vmatpush.msra.mxu0 %v55
    %80 = vmatpush.msra.mxu0 %v54
    %81 = vmatpush.msra.mxu0 %v53
    %82 = vmatpush.msra.mxu0 %v52
    %83 = vmatpush.msra.mxu0 %v51
    %84 = vmatmul.f32.gmra.mxu0 %v63
    %v85 = vpop.f32.mrf.mxu0
    %v86 = vadd.f32 %v60, %v85
    %87 = vmatmul.f32.gmra.mxu0 %v66
    %v88 = vpop.f32.mrf.mxu0
    %v89 = vadd.f32 %v60, %v88
    %90 = vdwg.mxu0
    %v91 = vmax.f32 %v86, 0.0
    %v92 = vmax.f32 %v89, 0.0
    %v93 = vld [vmem:[#allocation2 + $0x40] sm:$0xff]
    %v94 = vld [vmem:[#allocation2 + $0x48] sm:$0xff]
    %v95 = vld [vmem:[#allocation2 + $0x50] sm:$0xff]
    %v96 = vld [vmem:[#allocation2 + $0x58] sm:$0xff]
    %v97 = vld [vmem:[%s6 + $0x1] sm:$0x1]
    %v98 = vperm.slane %v97, 0
    %vm99 = vcmask 261120
    %v101 = vsel %vm99, %v91, 0
    %v104 = vsel %vm99, %v92, 0
    %106 = vmatpush.msra.mxu0 0.0
    %107 = vmatpush.msra.mxu0 0.0
    %108 = vmatpush.msra.mxu0 0.0
    %109 = vmatpush.msra.mxu0 0.0
    %110 = vmatpush.msra.mxu0 0.0
    %111 = vmatpush.msra.mxu0 0.0
    %112 = vmatpush.msra.mxu0 0.0
    %113 = vmatpush.msra.mxu0 0.0
    %114 = vmatpush.msra.mxu0 0.0
    %115 = vmatpush.msra.mxu0 0.0
    %116 = vmatpush.msra.mxu0 0.0
    %117 = vmatpush.msra.mxu0 0.0
    %118 = vmatpush.msra.mxu0 %v96
    %119 = vmatpush.msra.mxu0 %v95
    %120 = vmatpush.msra.mxu0 %v94
    %121 = vmatpush.msra.mxu0 %v93
    %122 = vmatmul.f32.gmra.mxu0 %v101
    %v123 = vpop.f32.mrf.mxu0
    %v124 = vadd.f32 %v98, %v123
    %125 = vmatmul.f32.gmra.mxu0 %v104
    %v126 = vpop.f32.mrf.mxu0
    %v127 = vadd.f32 %v98, %v126
    %128 = vdwg.mxu0
    %v129 = vmax.f32 %v124, 0.0
    %v130 = vmax.f32 %v127, 0.0
    %v131 = vld [vmem:[#allocation2 + $0x60] sm:$0xff]
    %v132 = vld [vmem:[#allocation2 + $0x68] sm:$0xff]
    %v133 = vld [vmem:[#allocation2 + $0x70] sm:$0xff]
    %v134 = vld [vmem:[#allocation2 + $0x78] sm:$0xff]
    %v135 = vld [vmem:[%s6 + $0x2] sm:$0x1]
    %v136 = vperm.slane %v135, 0
    %v138 = vsel %vm99, %v129, 0
    %v141 = vsel %vm99, %v130, 0
    %143 = vmatpush.msra.mxu0 0.0
    %144 = vmatpush.msra.mxu0 0.0
    %145 = vmatpush.msra.mxu0 0.0
    %146 = vmatpush.msra.mxu0 0.0
    %147 = vmatpush.msra.mxu0 0.0
    %148 = vmatpush.msra.mxu0 0.0
    %149 = vmatpush.msra.mxu0 0.0
    %150 = vmatpush.msra.mxu0 0.0
    %151 = vmatpush.msra.mxu0 0.0
    %152 = vmatpush.msra.mxu0 0.0
    %153 = vmatpush.msra.mxu0 0.0
    %154 = vmatpush.msra.mxu0 0.0
    %155 = vmatpush.msra.mxu0 %v134
    %156 = vmatpush.msra.mxu0 %v133
    %157 = vmatpush.msra.mxu0 %v132
    %158 = vmatpush.msra.mxu0 %v131
    %159 = vmatmul.f32.gmra.mxu0 %v138
    %v160 = vpop.f32.mrf.mxu0
    %v161 = vadd.f32 %v136, %v160
    %162 = vmatmul.f32.gmra.mxu0 %v141
    %v163 = vpop.f32.mrf.mxu0
    %v164 = vadd.f32 %v136, %v163
    %165 = vdwg.mxu0
    %v166 = vmul.f32 %v47, %v161
    %v167 = vmul.f32 %v48, %v164
    %v168 = vadd.f32 %v43, %v166
    %v169 = vadd.f32 %v44, %v167
    %v170 = vld [vmem:[%s6 + $0x3] sm:$0x1]
    %v171 = vld [vmem:[%s6 + $0x4] sm:$0x1]
    %v172 = vsel %vm99, %v168, 0.0
    %173 = vadd.xlane.f32.xlu0 %v172
    %v174 = vpop.xlane.xlu0 %173
    %v175 = vsel %vm99, %v169, 0.0
    %176 = vadd.xlane.f32.xlu0 %v175
    %v177 = vpop.xlane.xlu0 %176
    %v178 = vrcp.pop 32.0
    %v179 = vmul.f32 32.0, %v178
    %v180 = vsub.f32 1.0, %v179
    %v181 = vmul.f32 %v178, %v180
    %v182 = vadd.f32 %v178, %v181
    %vm183 = vweird.f32 %v178
    %v184 = vsel %vm183, %v178, %v182
    %v185 = vmul.f32 %v174, %v184
    %v186 = vmul.f32 %v177, %v184
    %v187 = vsub.f32 %v168, %v185
    %v188 = vsub.f32 %v169, %v186
    %v189 = vmul.f32 %v187, %v187
    %v190 = vmul.f32 %v188, %v188
    %v191 = vsel %vm99, %v189, 0.0
    %192 = vadd.xlane.f32.xlu0 %v191
    %v193 = vpop.xlane.xlu0 %192
    %v194 = vsel %vm99, %v190, 0.0
    %195 = vadd.xlane.f32.xlu0 %v194
    %v196 = vpop.xlane.xlu0 %195
    %v197 = vmul.f32 %v193, %v184
    %v198 = vmul.f32 %v196, %v184
    %v199 = vadd.f32 %v197, 1e-05
    %v200 = vadd.f32 %v198, 1e-05
    %v201 = vrsqrt.pop %v199
    %v202 = vmul.f32 %v201, %v199
    %v203 = vmul.f32 %v202, %v201
    %v204 = vmul.f32 0.5, %v203
    %v205 = vsub.f32 1.5, %v204
    %v206 = vmul.f32 %v201, %v205
    %vm207 = vweird.f32 %v199
    %vm208 = vweird.f32 %v201
    %vm209 = vmor %vm207, %vm208
    %v210 = vsel %vm209, %v201, %v206
    %v211 = vrsqrt.pop %v200
    %v212 = vmul.f32 %v211, %v200
    %v213 = vmul.f32 %v212, %v211
    %v214 = vmul.f32 0.5, %v213
    %v215 = vsub.f32 1.5, %v214
    %v216 = vmul.f32 %v211, %v215
    %vm217 = vweird.f32 %v200
    %vm218 = vweird.f32 %v211
    %vm219 = vmor %vm217, %vm218
    %v220 = vsel %vm219, %v211, %v216
    %v221 = vmul.f32 %v187, %v210
    %v222 = vmul.f32 %v188, %v220
    %v223 = vperm.slane %v170, 0
    %v224 = vmul.f32 %v221, %v223
    %v225 = vmul.f32 %v222, %v223
    %v226 = vperm.slane %v171, 0
    %v227 = vadd.f32 %v224, %v226
    %v228 = vadd.f32 %v225, %v226
    %v229 = vmul.f32 %v227, 0.5
    %v230 = vmul.f32 %v228, 0.5
    %v231 = vmul.f32 %v227, 0.044715
    %v232 = vmul.f32 %v228, 0.044715
    %v233 = vmul.f32 %v231, %v227
    %v234 = vmul.f32 %v232, %v228
    %v235 = vmul.f32 %v233, %v227
    %v236 = vmul.f32 %v234, %v228
    %v237 = vadd.f32 %v227, %v235
    %v238 = vadd.f32 %v228, %v236
    %v239 = vmul.f32 %v237, 0.7978846
    %v240 = vmul.f32 %v238, 0.7978846
    %v241 = vtanh.pop %v239
    %v242 = vtanh.pop %v240
    %v243 = vadd.f32 %v241, 1.0
    %v244 = vadd.f32 %v242, 1.0
    %v245 = vmul.f32 %v229, %v243
    %v246 = vmul.f32 %v230, %v244
    %v247 = vld [vmem:[#allocation2 + $0x80] sm:$0xff]
    %v248 = vld [vmem:[#allocation2 + $0x88] sm:$0xff]
    %v249 = vld [vmem:[#allocation2 + $0x90] sm:$0xff]
    %v250 = vld [vmem:[#allocation2 + $0x98] sm:$0xff]
    %v251 = vld [vmem:[%s6 + $0x5] sm:$0x1]
    %v252 = vld [vmem:[#allocation2 + $0xa0] sm:$0xff]
    %v253 = vld [vmem:[#allocation2 + $0xa8] sm:$0xff]
    %v254 = vld [vmem:[#allocation2 + $0xb0] sm:$0xff]
    %v255 = vld [vmem:[#allocation2 + $0xb8] sm:$0xff]
    %v256 = vld [vmem:[%s6 + $0x6] sm:$0x1]
    %v257 = vperm.slane %v251, 0
    %v259 = vsel %vm99, %v245, 0
    %v262 = vsel %vm99, %v246, 0
    %264 = vmatpush.msra.mxu0 0.0
    %265 = vmatpush.msra.mxu0 0.0
    %266 = vmatpush.msra.mxu0 0.0
    %267 = vmatpush.msra.mxu0 0.0
    %268 = vmatpush.msra.mxu0 0.0
    %269 = vmatpush.msra.mxu0 0.0
    %270 = vmatpush.msra.mxu0 0.0
    %271 = vmatpush.msra.mxu0 0.0
    %272 = vmatpush.msra.mxu0 0.0
    %273 = vmatpush.msra.mxu0 0.0
    %274 = vmatpush.msra.mxu0 0.0
    %275 = vmatpush.msra.mxu0 0.0
    %276 = vmatpush.msra.mxu0 %v250
    %277 = vmatpush.msra.mxu0 %v249
    %278 = vmatpush.msra.mxu0 %v248
    %279 = vmatpush.msra.mxu0 %v247
    %280 = vmatmul.f32.gmra.mxu0 %v259
    %v281 = vpop.f32.mrf.mxu0
    %v282 = vadd.f32 %v257, %v281
    %283 = vmatmul.f32.gmra.mxu0 %v262
    %v284 = vpop.f32.mrf.mxu0
    %v285 = vadd.f32 %v257, %v284
    %286 = vdwg.mxu0
    %v287 = vmul.f32 %v282, 0.35355338
    %v288 = vmul.f32 %v285, 0.35355338
    %291 = vrot.lane.b32.xlu0 %v282, 96
    %v292 = vpop.permute.xlu0 %291
    %293 = vrot.lane.b32.xlu0 %v285, 96
    %v294 = vpop.permute.xlu0 %293
    %vm295 = vcmask 64512
    %v297 = vsel %vm295, %v287, 0
    %v300 = vsel %vm295, %v288, 0
    %v302 = vsel %vm295, %v292, 0
    %v304 = vsel %vm295, %v294, 0
    %306 = vmatpush.xpose.msra.mxu0 0.0
    %307 = vmatpush.xpose.msra.mxu0 0.0
    %308 = vmatpush.xpose.msra.mxu0 0.0
    %309 = vmatpush.xpose.msra.mxu0 0.0
    %310 = vmatpush.xpose.msra.mxu0 0.0
    %311 = vmatpush.xpose.msra.mxu0 0.0
    %312 = vmatpush.xpose.msra.mxu0 0.0
    %313 = vmatpush.xpose.msra.mxu0 0.0
    %314 = vmatpush.xpose.msra.mxu0 0.0
    %315 = vmatpush.xpose.msra.mxu0 0.0
    %316 = vmatpush.xpose.msra.mxu0 0.0
    %317 = vmatpush.xpose.msra.mxu0 0.0
    %318 = vmatpush.xpose.msra.mxu0 0.0
    %319 = vmatpush.xpose.msra.mxu0 0.0
    %320 = vmatpush.xpose.msra.mxu0 %v304
    %321 = vmatpush.xpose.msra.mxu0 %v302
    %322 = vmatmul.f32.gmra.mxu0 %v297
    %v323 = vpop.f32.mrf.mxu0
    %v324 = vadd.f32 %v49, %v323
    %325 = vmatmul.f32.gmra.mxu0 %v300
    %v326 = vpop.f32.mrf.mxu0
    %v327 = vadd.f32 %v50, %v326
    %328 = vdwg.mxu0
    %vm329 = vcmask 130048
    %v330 = vsel %vm329, %v324, -inf
    %331 = vmax.xlane.f32.xlu0 %v330
    %v332 = vpop.xlane.xlu0 %331
    %v333 = vsel %vm329, %v327, -inf
    %334 = vmax.xlane.f32.xlu0 %v333
    %v335 = vpop.xlane.xlu0 %334
    %v336 = vsub.f32 %v324, %v332
    %v337 = vsub.f32 %v327, %v335
    %v338 = vmul.f32 %v336, 1.442695
    %v339 = vpow.pop %v338
    %v340 = vmul.f32 %v337, 1.442695
    %v341 = vpow.pop %v340
    %v342 = vsel %vm329, %v339, 0.0
    %343 = vadd.xlane.f32.xlu0 %v342
    %v344 = vpop.xlane.xlu0 %343
    %v345 = vsel %vm329, %v341, 0.0
    %346 = vadd.xlane.f32.xlu0 %v345
    %v347 = vpop.xlane.xlu0 %346
    %v348 = vrcp.pop %v344
    %v349 = vmul.f32 %v344, %v348
    %v350 = vsub.f32 1.0, %v349
    %v351 = vmul.f32 %v348, %v350
    %v352 = vadd.f32 %v348, %v351
    %vm353 = vweird.f32 %v344
    %vm354 = vweird.f32 %v348
    %vm355 = vmor %vm353, %vm354
    %v356 = vsel %vm355, %v348, %v352
    %v357 = vand.u32 2147483647, %v344
    %vm358 = vcmp.eq.f32.partialorder %v357, 8.507059e+37
    %v359 = vand.u32 %v344, 2147483648
    %v360 = vor.u32 1.1754944e-38, %v359
    %v361 = vsel %vm358, %v360, %v356
    %v362 = vmul.f32 %v339, %v361
    %v363 = vrcp.pop %v347
    %v364 = vmul.f32 %v347, %v363
    %v365 = vsub.f32 1.0, %v364
    %v366 = vmul.f32 %v363, %v365
    %v367 = vadd.f32 %v363, %v366
    %vm368 = vweird.f32 %v347
    %vm369 = vweird.f32 %v363
    %vm370 = vmor %vm368, %vm369
    %v371 = vsel %vm370, %v363, %v367
    %v372 = vand.u32 2147483647, %v347
    %vm373 = vcmp.eq.f32.partialorder %v372, 8.507059e+37
    %v374 = vand.u32 %v347, 2147483648
    %v375 = vor.u32 1.1754944e-38, %v374
    %v376 = vsel %vm373, %v375, %v371
    %v377 = vmul.f32 %v341, %v376
    %378 = vrot.lane.b32.xlu0 %v282, 64
    %v379 = vpop.permute.xlu0 %378
    %380 = vrot.lane.b32.xlu0 %v285, 64
    %v381 = vpop.permute.xlu0 %380
    %v385 = vsel %vm329, %v362, 0
    %v388 = vsel %vm329, %v377, 0
    %390 = vmatpush.msra.mxu0 0.0
    %391 = vmatpush.msra.mxu0 0.0
    %392 = vmatpush.msra.mxu0 0.0
    %393 = vmatpush.msra.mxu0 0.0
    %394 = vmatpush.msra.mxu0 0.0
    %395 = vmatpush.msra.mxu0 0.0
    %396 = vmatpush.msra.mxu0 0.0
    %397 = vmatpush.msra.mxu0 0.0
    %398 = vmatpush.msra.mxu0 0.0
    %399 = vmatpush.msra.mxu0 0.0
    %400 = vmatpush.msra.mxu0 0.0
    %401 = vmatpush.msra.mxu0 0.0
    %402 = vmatpush.msra.mxu0 0.0
    %403 = vmatpush.msra.mxu0 0.0
    %404 = vmatpush.msra.mxu0 %v381
    %405 = vmatpush.msra.mxu0 %v379
    %406 = vmatmul.f32.gmra.mxu0 %v385
    %v407 = vpop.f32.mrf.mxu0
    %v408 = vadd.f32 0.0, %v407
    %409 = vmatmul.f32.gmra.mxu0 %v388
    %v410 = vpop.f32.mrf.mxu0
    %v411 = vadd.f32 0.0, %v410
    %412 = vdwg.mxu0
    %413 = vrot.lane.b32.xlu0 %v287, 120
    %v414 = vpop.permute.xlu0 %413
    %415 = vrot.lane.b32.xlu0 %v288, 120
    %v416 = vpop.permute.xlu0 %415
    %417 = vrot.lane.b32.xlu0 %v282, 88
    %v418 = vpop.permute.xlu0 %417
    %419 = vrot.lane.b32.xlu0 %v285, 88
    %v420 = vpop.permute.xlu0 %419
    %v421 = vsel %vm295, %v414, 0
    %v423 = vsel %vm295, %v416, 0
    %v425 = vsel %vm295, %v418, 0
    %v427 = vsel %vm295, %v420, 0
    %429 = vmatpush.xpose.msra.mxu0 0.0
    %430 = vmatpush.xpose.msra.mxu0 0.0
    %431 = vmatpush.xpose.msra.mxu0 0.0
    %432 = vmatpush.xpose.msra.mxu0 0.0
    %433 = vmatpush.xpose.msra.mxu0 0.0
    %434 = vmatpush.xpose.msra.mxu0 0.0
    %435 = vmatpush.xpose.msra.mxu0 0.0
    %436 = vmatpush.xpose.msra.mxu0 0.0
    %437 = vmatpush.xpose.msra.mxu0 0.0
    %438 = vmatpush.xpose.msra.mxu0 0.0
    %439 = vmatpush.xpose.msra.mxu0 0.0
    %440 = vmatpush.xpose.msra.mxu0 0.0
    %441 = vmatpush.xpose.msra.mxu0 0.0
    %442 = vmatpush.xpose.msra.mxu0 0.0
    %443 = vmatpush.xpose.msra.mxu0 %v427
    %444 = vmatpush.xpose.msra.mxu0 %v425
    %445 = vmatmul.f32.gmra.mxu0 %v421
    %v446 = vpop.f32.mrf.mxu0
    %v447 = vadd.f32 %v49, %v446
    %448 = vmatmul.f32.gmra.mxu0 %v423
    %v449 = vpop.f32.mrf.mxu0
    %v450 = vadd.f32 %v50, %v449
    %451 = vdwg.mxu0
    %v452 = vsel %vm329, %v447, -inf
    %453 = vmax.xlane.f32.xlu0 %v452
    %v454 = vpop.xlane.xlu0 %453
    %v455 = vsel %vm329, %v450, -inf
    %456 = vmax.xlane.f32.xlu0 %v455
    %v457 = vpop.xlane.xlu0 %456
    %v458 = vsub.f32 %v447, %v454
    %v459 = vsub.f32 %v450, %v457
    %v460 = vmul.f32 %v458, 1.442695
    %v461 = vpow.pop %v460
    %v462 = vmul.f32 %v459, 1.442695
    %v463 = vpow.pop %v462
    %v464 = vsel %vm329, %v461, 0.0
    %465 = vadd.xlane.f32.xlu0 %v464
    %v466 = vpop.xlane.xlu0 %465
    %v467 = vsel %vm329, %v463, 0.0
    %468 = vadd.xlane.f32.xlu0 %v467
    %v469 = vpop.xlane.xlu0 %468
    %v470 = vrcp.pop %v466
    %v471 = vmul.f32 %v466, %v470
    %v472 = vsub.f32 1.0, %v471
    %v473 = vmul.f32 %v470, %v472
    %v474 = vadd.f32 %v470, %v473
    %vm475 = vweird.f32 %v466
    %vm476 = vweird.f32 %v470
    %vm477 = vmor %vm475, %vm476
    %v478 = vsel %vm477, %v470, %v474
    %v479 = vand.u32 2147483647, %v466
    %vm480 = vcmp.eq.f32.partialorder %v479, 8.507059e+37
    %v481 = vand.u32 %v466, 2147483648
    %v482 = vor.u32 1.1754944e-38, %v481
    %v483 = vsel %vm480, %v482, %v478
    %v484 = vmul.f32 %v461, %v483
    %v485 = vrcp.pop %v469
    %v486 = vmul.f32 %v469, %v485
    %v487 = vsub.f32 1.0, %v486
    %v488 = vmul.f32 %v485, %v487
    %v489 = vadd.f32 %v485, %v488
    %vm490 = vweird.f32 %v469
    %vm491 = vweird.f32 %v485
    %vm492 = vmor %vm490, %vm491
    %v493 = vsel %vm492, %v485, %v489
    %v494 = vand.u32 2147483647, %v469
    %vm495 = vcmp.eq.f32.partialorder %v494, 8.507059e+37
    %v496 = vand.u32 %v469, 2147483648
    %v497 = vor.u32 1.1754944e-38, %v496
    %v498 = vsel %vm495, %v497, %v493
    %v499 = vmul.f32 %v463, %v498
    %500 = vrot.lane.b32.xlu0 %v282, 56
    %v501 = vpop.permute.xlu0 %500
    %502 = vrot.lane.b32.xlu0 %v285, 56
    %v503 = vpop.permute.xlu0 %502
    %v507 = vsel %vm329, %v484, 0
    %v510 = vsel %vm329, %v499, 0
    %512 = vmatpush.msra.mxu0 0.0
    %513 = vmatpush.msra.mxu0 0.0
    %514 = vmatpush.msra.mxu0 0.0
    %515 = vmatpush.msra.mxu0 0.0
    %516 = vmatpush.msra.mxu0 0.0
    %517 = vmatpush.msra.mxu0 0.0
    %518 = vmatpush.msra.mxu0 0.0
    %519 = vmatpush.msra.mxu0 0.0
    %520 = vmatpush.msra.mxu0 0.0
    %521 = vmatpush.msra.mxu0 0.0
    %522 = vmatpush.msra.mxu0 0.0
    %523 = vmatpush.msra.mxu0 0.0
    %524 = vmatpush.msra.mxu0 0.0
    %525 = vmatpush.msra.mxu0 0.0
    %526 = vmatpush.msra.mxu0 %v503
    %527 = vmatpush.msra.mxu0 %v501
    %528 = vmatmul.f32.gmra.mxu0 %v507
    %v529 = vpop.f32.mrf.mxu0
    %v530 = vadd.f32 0.0, %v529
    %531 = vmatmul.f32.gmra.mxu0 %v510
    %v532 = vpop.f32.mrf.mxu0
    %v533 = vadd.f32 0.0, %v532
    %534 = vdwg.mxu0
    %535 = vrot.lane.b32.xlu0 %v287, 112
    %v536 = vpop.permute.xlu0 %535
    %537 = vrot.lane.b32.xlu0 %v288, 112
    %v538 = vpop.permute.xlu0 %537
    %539 = vrot.lane.b32.xlu0 %v282, 80
    %v540 = vpop.permute.xlu0 %539
    %541 = vrot.lane.b32.xlu0 %v285, 80
    %v542 = vpop.permute.xlu0 %541
    %v543 = vsel %vm295, %v536, 0
    %v545 = vsel %vm295, %v538, 0
    %v547 = vsel %vm295, %v540, 0
    %v549 = vsel %vm295, %v542, 0
    %551 = vmatpush.xpose.msra.mxu0 0.0
    %552 = vmatpush.xpose.msra.mxu0 0.0
    %553 = vmatpush.xpose.msra.mxu0 0.0
    %554 = vmatpush.xpose.msra.mxu0 0.0
    %555 = vmatpush.xpose.msra.mxu0 0.0
    %556 = vmatpush.xpose.msra.mxu0 0.0
    %557 = vmatpush.xpose.msra.mxu0 0.0
    %558 = vmatpush.xpose.msra.mxu0 0.0
    %559 = vmatpush.xpose.msra.mxu0 0.0
    %560 = vmatpush.xpose.msra.mxu0 0.0
    %561 = vmatpush.xpose.msra.mxu0 0.0
    %562 = vmatpush.xpose.msra.mxu0 0.0
    %563 = vmatpush.xpose.msra.mxu0 0.0
    %564 = vmatpush.xpose.msra.mxu0 0.0
    %565 = vmatpush.xpose.msra.mxu0 %v549
    %566 = vmatpush.xpose.msra.mxu0 %v547
    %567 = vmatmul.f32.gmra.mxu0 %v543
    %v568 = vpop.f32.mrf.mxu0
    %v569 = vadd.f32 %v49, %v568
    %570 = vmatmul.f32.gmra.mxu0 %v545
    %v571 = vpop.f32.mrf.mxu0
    %v572 = vadd.f32 %v50, %v571
    %573 = vdwg.mxu0
    %v574 = vsel %vm329, %v569, -inf
    %575 = vmax.xlane.f32.xlu0 %v574
    %v576 = vpop.xlane.xlu0 %575
    %v577 = vsel %vm329, %v572, -inf
    %578 = vmax.xlane.f32.xlu0 %v577
    %v579 = vpop.xlane.xlu0 %578
    %v580 = vsub.f32 %v569, %v576
    %v581 = vsub.f32 %v572, %v579
    %v582 = vmul.f32 %v580, 1.442695
    %v583 = vpow.pop %v582
    %v584 = vmul.f32 %v581, 1.442695
    %v585 = vpow.pop %v584
    %v586 = vsel %vm329, %v583, 0.0
    %587 = vadd.xlane.f32.xlu0 %v586
    %v588 = vpop.xlane.xlu0 %587
    %v589 = vsel %vm329, %v585, 0.0
    %590 = vadd.xlane.f32.xlu0 %v589
    %v591 = vpop.xlane.xlu0 %590
    %v592 = vrcp.pop %v588
    %v593 = vmul.f32 %v588, %v592
    %v594 = vsub.f32 1.0, %v593
    %v595 = vmul.f32 %v592, %v594
    %v596 = vadd.f32 %v592, %v595
    %vm597 = vweird.f32 %v588
    %vm598 = vweird.f32 %v592
    %vm599 = vmor %vm597, %vm598
    %v600 = vsel %vm599, %v592, %v596
    %v601 = vand.u32 2147483647, %v588
    %vm602 = vcmp.eq.f32.partialorder %v601, 8.507059e+37
    %v603 = vand.u32 %v588, 2147483648
    %v604 = vor.u32 1.1754944e-38, %v603
    %v605 = vsel %vm602, %v604, %v600
    %v606 = vmul.f32 %v583, %v605
    %v607 = vrcp.pop %v591
    %v608 = vmul.f32 %v591, %v607
    %v609 = vsub.f32 1.0, %v608
    %v610 = vmul.f32 %v607, %v609
    %v611 = vadd.f32 %v607, %v610
    %vm612 = vweird.f32 %v591
    %vm613 = vweird.f32 %v607
    %vm614 = vmor %vm612, %vm613
    %v615 = vsel %vm614, %v607, %v611
    %v616 = vand.u32 2147483647, %v591
    %vm617 = vcmp.eq.f32.partialorder %v616, 8.507059e+37
    %v618 = vand.u32 %v591, 2147483648
    %v619 = vor.u32 1.1754944e-38, %v618
    %v620 = vsel %vm617, %v619, %v615
    %v621 = vmul.f32 %v585, %v620
    %622 = vrot.lane.b32.xlu0 %v282, 48
    %v623 = vpop.permute.xlu0 %622
    %624 = vrot.lane.b32.xlu0 %v285, 48
    %v625 = vpop.permute.xlu0 %624
    %v629 = vsel %vm329, %v606, 0
    %v632 = vsel %vm329, %v621, 0
    %634 = vmatpush.msra.mxu0 0.0
    %635 = vmatpush.msra.mxu0 0.0
    %636 = vmatpush.msra.mxu0 0.0
    %637 = vmatpush.msra.mxu0 0.0
    %638 = vmatpush.msra.mxu0 0.0
    %639 = vmatpush.msra.mxu0 0.0
    %640 = vmatpush.msra.mxu0 0.0
    %641 = vmatpush.msra.mxu0 0.0
    %642 = vmatpush.msra.mxu0 0.0
    %643 = vmatpush.msra.mxu0 0.0
    %644 = vmatpush.msra.mxu0 0.0
    %645 = vmatpush.msra.mxu0 0.0
    %646 = vmatpush.msra.mxu0 0.0
    %647 = vmatpush.msra.mxu0 0.0
    %648 = vmatpush.msra.mxu0 %v625
    %649 = vmatpush.msra.mxu0 %v623
    %650 = vmatmul.f32.gmra.mxu0 %v629
    %v651 = vpop.f32.mrf.mxu0
    %v652 = vadd.f32 0.0, %v651
    %653 = vmatmul.f32.gmra.mxu0 %v632
    %v654 = vpop.f32.mrf.mxu0
    %v655 = vadd.f32 0.0, %v654
    %656 = vdwg.mxu0
    %657 = vrot.lane.b32.xlu0 %v287, 104
    %v658 = vpop.permute.xlu0 %657
    %659 = vrot.lane.b32.xlu0 %v288, 104
    %v660 = vpop.permute.xlu0 %659
    %661 = vrot.lane.b32.xlu0 %v282, 72
    %v662 = vpop.permute.xlu0 %661
    %663 = vrot.lane.b32.xlu0 %v285, 72
    %v664 = vpop.permute.xlu0 %663
    %v665 = vsel %vm295, %v658, 0
    %v667 = vsel %vm295, %v660, 0
    %v669 = vsel %vm295, %v662, 0
    %v671 = vsel %vm295, %v664, 0
    %673 = vmatpush.xpose.msra.mxu0 0.0
    %674 = vmatpush.xpose.msra.mxu0 0.0
    %675 = vmatpush.xpose.msra.mxu0 0.0
    %676 = vmatpush.xpose.msra.mxu0 0.0
    %677 = vmatpush.xpose.msra.mxu0 0.0
    %678 = vmatpush.xpose.msra.mxu0 0.0
    %679 = vmatpush.xpose.msra.mxu0 0.0
    %680 = vmatpush.xpose.msra.mxu0 0.0
    %681 = vmatpush.xpose.msra.mxu0 0.0
    %682 = vmatpush.xpose.msra.mxu0 0.0
    %683 = vmatpush.xpose.msra.mxu0 0.0
    %684 = vmatpush.xpose.msra.mxu0 0.0
    %685 = vmatpush.xpose.msra.mxu0 0.0
    %686 = vmatpush.xpose.msra.mxu0 0.0
    %687 = vmatpush.xpose.msra.mxu0 %v671
    %688 = vmatpush.xpose.msra.mxu0 %v669
    %689 = vmatmul.f32.gmra.mxu0 %v665
    %v690 = vpop.f32.mrf.mxu0
    %v691 = vadd.f32 %v49, %v690
    %692 = vmatmul.f32.gmra.mxu0 %v667
    %v693 = vpop.f32.mrf.mxu0
    %v694 = vadd.f32 %v50, %v693
    %695 = vdwg.mxu0
    %v696 = vsel %vm329, %v691, -inf
    %697 = vmax.xlane.f32.xlu0 %v696
    %v698 = vpop.xlane.xlu0 %697
    %v699 = vsel %vm329, %v694, -inf
    %700 = vmax.xlane.f32.xlu0 %v699
    %v701 = vpop.xlane.xlu0 %700
    %v702 = vsub.f32 %v691, %v698
    %v703 = vsub.f32 %v694, %v701
    %v704 = vmul.f32 %v702, 1.442695
    %v705 = vpow.pop %v704
    %v706 = vmul.f32 %v703, 1.442695
    %v707 = vpow.pop %v706
    %v708 = vsel %vm329, %v705, 0.0
    %709 = vadd.xlane.f32.xlu0 %v708
    %v710 = vpop.xlane.xlu0 %709
    %v711 = vsel %vm329, %v707, 0.0
    %712 = vadd.xlane.f32.xlu0 %v711
    %v713 = vpop.xlane.xlu0 %712
    %v714 = vrcp.pop %v710
    %v715 = vmul.f32 %v710, %v714
    %v716 = vsub.f32 1.0, %v715
    %v717 = vmul.f32 %v714, %v716
    %v718 = vadd.f32 %v714, %v717
    %vm719 = vweird.f32 %v710
    %vm720 = vweird.f32 %v714
    %vm721 = vmor %vm719, %vm720
    %v722 = vsel %vm721, %v714, %v718
    %v723 = vand.u32 2147483647, %v710
    %vm724 = vcmp.eq.f32.partialorder %v723, 8.507059e+37
    %v725 = vand.u32 %v710, 2147483648
    %v726 = vor.u32 1.1754944e-38, %v725
    %v727 = vsel %vm724, %v726, %v722
    %v728 = vmul.f32 %v705, %v727
    %v729 = vrcp.pop %v713
    %v730 = vmul.f32 %v713, %v729
    %v731 = vsub.f32 1.0, %v730
    %v732 = vmul.f32 %v729, %v731
    %v733 = vadd.f32 %v729, %v732
    %vm734 = vweird.f32 %v713
    %vm735 = vweird.f32 %v729
    %vm736 = vmor %vm734, %vm735
    %v737 = vsel %vm736, %v729, %v733
    %v738 = vand.u32 2147483647, %v713
    %vm739 = vcmp.eq.f32.partialorder %v738, 8.507059e+37
    %v740 = vand.u32 %v713, 2147483648
    %v741 = vor.u32 1.1754944e-38, %v740
    %v742 = vsel %vm739, %v741, %v737
    %v743 = vmul.f32 %v707, %v742
    %744 = vrot.lane.b32.xlu0 %v282, 40
    %v745 = vpop.permute.xlu0 %744
    %746 = vrot.lane.b32.xlu0 %v285, 40
    %v747 = vpop.permute.xlu0 %746
    %v751 = vsel %vm329, %v728, 0
    %v754 = vsel %vm329, %v743, 0
    %756 = vmatpush.msra.mxu0 0.0
    %757 = vmatpush.msra.mxu0 0.0
    %758 = vmatpush.msra.mxu0 0.0
    %759 = vmatpush.msra.mxu0 0.0
    %760 = vmatpush.msra.mxu0 0.0
    %761 = vmatpush.msra.mxu0 0.0
    %762 = vmatpush.msra.mxu0 0.0
    %763 = vmatpush.msra.mxu0 0.0
    %764 = vmatpush.msra.mxu0 0.0
    %765 = vmatpush.msra.mxu0 0.0
    %766 = vmatpush.msra.mxu0 0.0
    %767 = vmatpush.msra.mxu0 0.0
    %768 = vmatpush.msra.mxu0 0.0
    %769 = vmatpush.msra.mxu0 0.0
    %770 = vmatpush.msra.mxu0 %v747
    %771 = vmatpush.msra.mxu0 %v745
    %772 = vmatmul.f32.gmra.mxu0 %v751
    %v773 = vpop.f32.mrf.mxu0
    %v774 = vadd.f32 0.0, %v773
    %775 = vmatmul.f32.gmra.mxu0 %v754
    %v776 = vpop.f32.mrf.mxu0
    %v777 = vadd.f32 0.0, %v776
    %778 = vdwg.mxu0
    %781 = vrot.lane.b32.xlu0 %v530, 8
    %v782 = vpop.permute.xlu0 %781
    %783 = vrot.lane.b32.xlu0 %v533, 8
    %v784 = vpop.permute.xlu0 %783
    %789 = vrot.lane.b32.xlu0 %v652, 16
    %v790 = vpop.permute.xlu0 %789
    %791 = vrot.lane.b32.xlu0 %v655, 16
    %v792 = vpop.permute.xlu0 %791
    %797 = vrot.lane.b32.xlu0 %v774, 24
    %v798 = vpop.permute.xlu0 %797
    %799 = vrot.lane.b32.xlu0 %v777, 24
    %v800 = vpop.permute.xlu0 %799
    %v803 = vsel %vm295, %v408, %v782
    %v804 = vsel %vm295, %v411, %v784
    %v805 = vsel %vm329, %v803, %v790
    %v806 = vsel %vm329, %v804, %v792
    %vm807 = vcmask 195584
    %v808 = vsel %vm807, %v805, %v798
    %v809 = vsel %vm807, %v806, %v800
    %v810 = vperm.slane %v256, 0
    %v812 = vsel %vm99, %v808, 0
    %v815 = vsel %vm99, %v809, 0
    %817 = vmatpush.msra.mxu0 0.0
    %818 = vmatpush.msra.mxu0 0.0
    %819 = vmatpush.msra.mxu0 0.0
    %820 = vmatpush.msra.mxu0 0.0
    %821 = vmatpush.msra.mxu0 0.0
    %822 = vmatpush.msra.mxu0 0.0
    %823 = vmatpush.msra.mxu0 0.0
    %824 = vmatpush.msra.mxu0 0.0
    %825 = vmatpush.msra.mxu0 0.0
    %826 = vmatpush.msra.mxu0 0.0
    %827 = vmatpush.msra.mxu0 0.0
    %828 = vmatpush.msra.mxu0 0.0
    %829 = vmatpush.msra.mxu0 %v255
    %830 = vmatpush.msra.mxu0 %v254
    %831 = vmatpush.msra.mxu0 %v253
    %832 = vmatpush.msra.mxu0 %v252
    %833 = vmatmul.f32.gmra.mxu0 %v812
    %v834 = vpop.f32.mrf.mxu0
    %v835 = vadd.f32 %v810, %v834
    %836 = vmatmul.f32.gmra.mxu0 %v815
    %v837 = vpop.f32.mrf.mxu0
    %v838 = vadd.f32 %v810, %v837
    %839 = vdwg.mxu0
    %v840 = vadd.f32 %v245, %v835
    %v841 = vadd.f32 %v246, %v838
    %v842 = vld [vmem:[%s6 + $0x9] sm:$0x1]
    %v843 = vld [vmem:[%s6 + $0xa] sm:$0x1]
    %v844 = vsel %vm99, %v840, 0.0
    %845 = vadd.xlane.f32.xlu0 %v844
    %v846 = vpop.xlane.xlu0 %845
    %v847 = vsel %vm99, %v841, 0.0
    %848 = vadd.xlane.f32.xlu0 %v847
    %v849 = vpop.xlane.xlu0 %848
    %v850 = vmul.f32 %v846, %v184
    %v851 = vmul.f32 %v849, %v184
    %v852 = vsub.f32 %v840, %v850
    %v853 = vsub.f32 %v841, %v851
    %v854 = vmul.f32 %v852, %v852
    %v855 = vmul.f32 %v853, %v853
    %v856 = vsel %vm99, %v854, 0.0
    %857 = vadd.xlane.f32.xlu0 %v856
    %v858 = vpop.xlane.xlu0 %857
    %v859 = vsel %vm99, %v855, 0.0
    %860 = vadd.xlane.f32.xlu0 %v859
    %v861 = vpop.xlane.xlu0 %860
    %v862 = vmul.f32 %v858, %v184
    %v863 = vmul.f32 %v861, %v184
    %v864 = vadd.f32 %v862, 1e-05
    %v865 = vadd.f32 %v863, 1e-05
    %v866 = vrsqrt.pop %v864
    %v867 = vmul.f32 %v866, %v864
    %v868 = vmul.f32 %v867, %v866
    %v869 = vmul.f32 0.5, %v868
    %v870 = vsub.f32 1.5, %v869
    %v871 = vmul.f32 %v866, %v870
    %vm872 = vweird.f32 %v864
    %vm873 = vweird.f32 %v866
    %vm874 = vmor %vm872, %vm873
    %v875 = vsel %vm874, %v866, %v871
    %v876 = vrsqrt.pop %v865
    %v877 = vmul.f32 %v876, %v865
    %v878 = vmul.f32 %v877, %v876
    %v879 = vmul.f32 0.5, %v878
    %v880 = vsub.f32 1.5, %v879
    %v881 = vmul.f32 %v876, %v880
    %vm882 = vweird.f32 %v865
    %vm883 = vweird.f32 %v876
    %vm884 = vmor %vm882, %vm883
    %v885 = vsel %vm884, %v876, %v881
    %v886 = vmul.f32 %v852, %v875
    %v887 = vmul.f32 %v853, %v885
    %v888 = vperm.slane %v842, 0
    %v889 = vmul.f32 %v886, %v888
    %v890 = vmul.f32 %v887, %v888
    %v891 = vperm.slane %v843, 0
    %v892 = vadd.f32 %v889, %v891
    %v893 = vadd.f32 %v890, %v891
    %v894 = vld [vmem:[#allocation2 + $0xc0] sm:$0xff]
    %v895 = vld [vmem:[#allocation2 + $0xc8] sm:$0xff]
    %v896 = vld [vmem:[#allocation2 + $0xd0] sm:$0xff]
    %v897 = vld [vmem:[#allocation2 + $0xd8] sm:$0xff]
    %v898 = vld [vmem:[%s6 + $0x7] sm:$0x1]
    %v899 = vperm.slane %v898, 0
    %v901 = vsel %vm99, %v892, 0
    %v904 = vsel %vm99, %v893, 0
    %906 = vmatpush.msra.mxu0 0.0
    %907 = vmatpush.msra.mxu0 0.0
    %908 = vmatpush.msra.mxu0 0.0
    %909 = vmatpush.msra.mxu0 0.0
    %910 = vmatpush.msra.mxu0 0.0
    %911 = vmatpush.msra.mxu0 0.0
    %912 = vmatpush.msra.mxu0 0.0
    %913 = vmatpush.msra.mxu0 0.0
    %914 = vmatpush.msra.mxu0 0.0
    %915 = vmatpush.msra.mxu0 0.0
    %916 = vmatpush.msra.mxu0 0.0
    %917 = vmatpush.msra.mxu0 0.0
    %918 = vmatpush.msra.mxu0 %v897
    %919 = vmatpush.msra.mxu0 %v896
    %920 = vmatpush.msra.mxu0 %v895
    %921 = vmatpush.msra.mxu0 %v894
    %922 = vmatmul.f32.gmra.mxu0 %v901
    %v923 = vpop.f32.mrf.mxu0
    %v924 = vadd.f32 %v899, %v923
    %925 = vmatmul.f32.gmra.mxu0 %v904
    %v926 = vpop.f32.mrf.mxu0
    %v927 = vadd.f32 %v899, %v926
    %928 = vdwg.mxu0
    %v929 = vmax.f32 %v924, 0.0
    %v930 = vmax.f32 %v927, 0.0
    %v931 = vld [vmem:[#allocation2 + $0xe0] sm:$0xff]
    %v932 = vld [vmem:[#allocation2 + $0xe8] sm:$0xff]
    %v933 = vld [vmem:[#allocation2 + $0xf0] sm:$0xff]
    %v934 = vld [vmem:[#allocation2 + $0xf8] sm:$0xff]
    %v935 = vld [vmem:[#allocation2 + $0x100] sm:$0xff]
    %v936 = vld [vmem:[#allocation2 + $0x108] sm:$0xff]
    %v937 = vld [vmem:[#allocation2 + $0x110] sm:$0xff]
    %v938 = vld [vmem:[#allocation2 + $0x118] sm:$0xff]
    %v939 = vld [vmem:[%s6 + $0x8] sm:$0x1]
    %v940 = vperm.slane %v939, 0
    %v942 = vsel %vm61, %v929, 0
    %v945 = vsel %vm61, %v930, 0
    %947 = vmatpush.msra.mxu0 0.0
    %948 = vmatpush.msra.mxu0 0.0
    %949 = vmatpush.msra.mxu0 0.0
    %950 = vmatpush.msra.mxu0 0.0
    %951 = vmatpush.msra.mxu0 0.0
    %952 = vmatpush.msra.mxu0 0.0
    %953 = vmatpush.msra.mxu0 0.0
    %954 = vmatpush.msra.mxu0 0.0
    %955 = vmatpush.msra.mxu0 %v938
    %956 = vmatpush.msra.mxu0 %v937
    %957 = vmatpush.msra.mxu0 %v936
    %958 = vmatpush.msra.mxu0 %v935
    %959 = vmatpush.msra.mxu0 %v934
    %960 = vmatpush.msra.mxu0 %v933
    %961 = vmatpush.msra.mxu0 %v932
    %962 = vmatpush.msra.mxu0 %v931
    %963 = vmatmul.f32.gmra.mxu0 %v942
    %v964 = vpop.f32.mrf.mxu0
    %v965 = vadd.f32 %v940, %v964
    %966 = vmatmul.f32.gmra.mxu0 %v945
    %v967 = vpop.f32.mrf.mxu0
    %v968 = vadd.f32 %v940, %v967
    %969 = vdwg.mxu0
    %v970 = vadd.f32 %v892, %v965
    %v971 = vadd.f32 %v893, %v968
    %v972 = vld [vmem:[%s6 + $0xb] sm:$0x1]
    %v973 = vld [vmem:[%s6 + $0xc] sm:$0x1]
    %v974 = vsel %vm99, %v970, 0.0
    %975 = vadd.xlane.f32.xlu0 %v974
    %v976 = vpop.xlane.xlu0 %975
    %v977 = vsel %vm99, %v971, 0.0
    %978 = vadd.xlane.f32.xlu0 %v977
    %v979 = vpop.xlane.xlu0 %978
    %v980 = vmul.f32 %v976, %v184
    %v981 = vmul.f32 %v979, %v184
    %v982 = vsub.f32 %v970, %v980
    %v983 = vsub.f32 %v971, %v981
    %v984 = vmul.f32 %v982, %v982
    %v985 = vmul.f32 %v983, %v983
    %v986 = vsel %vm99, %v984, 0.0
    %987 = vadd.xlane.f32.xlu0 %v986
    %v988 = vpop.xlane.xlu0 %987
    %v989 = vsel %vm99, %v985, 0.0
    %990 = vadd.xlane.f32.xlu0 %v989
    %v991 = vpop.xlane.xlu0 %990
    %v992 = vmul.f32 %v988, %v184
    %v993 = vmul.f32 %v991, %v184
    %v994 = vadd.f32 %v992, 1e-05
    %v995 = vadd.f32 %v993, 1e-05
    %v996 = vrsqrt.pop %v994
    %v997 = vmul.f32 %v996, %v994
    %v998 = vmul.f32 %v997, %v996
    %v999 = vmul.f32 0.5, %v998
    %v1000 = vsub.f32 1.5, %v999
    %v1001 = vmul.f32 %v996, %v1000
    %vm1002 = vweird.f32 %v994
    %vm1003 = vweird.f32 %v996
    %vm1004 = vmor %vm1002, %vm1003
    %v1005 = vsel %vm1004, %v996, %v1001
    %v1006 = vrsqrt.pop %v995
    %v1007 = vmul.f32 %v1006, %v995
    %v1008 = vmul.f32 %v1007, %v1006
    %v1009 = vmul.f32 0.5, %v1008
    %v1010 = vsub.f32 1.5, %v1009
    %v1011 = vmul.f32 %v1006, %v1010
    %vm1012 = vweird.f32 %v995
    %vm1013 = vweird.f32 %v1006
    %vm1014 = vmor %vm1012, %vm1013
    %v1015 = vsel %vm1014, %v1006, %v1011
    %v1016 = vmul.f32 %v982, %v1005
    %v1017 = vmul.f32 %v983, %v1015
    %v1018 = vperm.slane %v972, 0
    %v1019 = vmul.f32 %v1016, %v1018
    %v1020 = vmul.f32 %v1017, %v1018
    %v1021 = vperm.slane %v973, 0
    %v1022 = vadd.f32 %v1019, %v1021
    %v1023 = vadd.f32 %v1020, %v1021
    %v1024 = vld [vmem:[%s2] sm:$0x1]
    %v1025 = vld [vmem:[%s2 + $0x1] sm:$0x1]
    %v1026 = vld [vmem:[#allocation2 + $0x1c0] sm:$0xff]
    %v1027 = vld [vmem:[#allocation2 + $0x1c8] sm:$0xff]
    %v1028 = vld [vmem:[#allocation2 + $0x1d0] sm:$0xff]
    %v1029 = vld [vmem:[#allocation2 + $0x1d8] sm:$0xff]
    %v1030 = vld [vmem:[%s6 + $0xd] sm:$0x1]
    %v1031 = vperm.slane %v1030, 0
    %1034 = vst [vmem:[#allocation1] ss:$9 sm:$0xff] %v1024
    %s1035 = scalar_lea.vmem [#allocation1], 1
    %1036 = vst [vmem:[%s1035] ss:$9 sm:$0xff] %v1025
    %v1037 = vld [vmem:[#allocation1] sm:$0xff]
    %v1038 = vsel %vm99, %v1037, 0
    %1040 = vmatpush.msra.mxu0 0.0
    %1041 = vmatpush.msra.mxu0 0.0
    %1042 = vmatpush.msra.mxu0 0.0
    %1043 = vmatpush.msra.mxu0 0.0
    %1044 = vmatpush.msra.mxu0 0.0
    %1045 = vmatpush.msra.mxu0 0.0
    %1046 = vmatpush.msra.mxu0 0.0
    %1047 = vmatpush.msra.mxu0 0.0
    %1048 = vmatpush.msra.mxu0 0.0
    %1049 = vmatpush.msra.mxu0 0.0
    %1050 = vmatpush.msra.mxu0 0.0
    %1051 = vmatpush.msra.mxu0 0.0
    %1052 = vmatpush.msra.mxu0 %v1029
    %1053 = vmatpush.msra.mxu0 %v1028
    %1054 = vmatpush.msra.mxu0 %v1027
    %1055 = vmatpush.msra.mxu0 %v1026
    %1056 = vmatmul.f32.gmra.mxu0 %v1038
    %v1057 = vpop.f32.mrf.mxu0
    %v1058 = vadd.f32 %v1031, %v1057
    %1059 = vdwg.mxu0
    %v1060 = vmax.f32 %v1058, 0.0
    %v1061 = vld [vmem:[#allocation2 + $0x1e0] sm:$0xff]
    %v1062 = vld [vmem:[#allocation2 + $0x1e8] sm:$0xff]
    %v1063 = vld [vmem:[#allocation2 + $0x1f0] sm:$0xff]
    %v1064 = vld [vmem:[#allocation2 + $0x1f8] sm:$0xff]
    %v1065 = vld [vmem:[%s6 + $0xe] sm:$0x1]
    %v1066 = vperm.slane %v1065, 0
    %v1068 = vsel %vm99, %v1060, 0
    %1070 = vmatpush.msra.mxu0 0.0
    %1071 = vmatpush.msra.mxu0 0.0
    %1072 = vmatpush.msra.mxu0 0.0
    %1073 = vmatpush.msra.mxu0 0.0
    %1074 = vmatpush.msra.mxu0 0.0
    %1075 = vmatpush.msra.mxu0 0.0
    %1076 = vmatpush.msra.mxu0 0.0
    %1077 = vmatpush.msra.mxu0 0.0
    %1078 = vmatpush.msra.mxu0 0.0
    %1079 = vmatpush.msra.mxu0 0.0
    %1080 = vmatpush.msra.mxu0 0.0
    %1081 = vmatpush.msra.mxu0 0.0
    %1082 = vmatpush.msra.mxu0 %v1064
    %1083 = vmatpush.msra.mxu0 %v1063
    %1084 = vmatpush.msra.mxu0 %v1062
    %1085 = vmatpush.msra.mxu0 %v1061
    %1086 = vmatmul.f32.gmra.mxu0 %v1068
    %v1087 = vpop.f32.mrf.mxu0
    %v1088 = vadd.f32 %v1066, %v1087
    %1089 = vdwg.mxu0
    %v1090 = vperm.slane %v1088, 0
    %v1091 = vperm.slane %v1088, 1
    %v1092 = vmul.f32 %v47, %v1090
    %v1093 = vmul.f32 %v48, %v1091
    %v1094 = vadd.f32 %v1022, %v1092
    %v1095 = vadd.f32 %v1023, %v1093
    %v1096 = vld [vmem:[%s6 + $0xf] sm:$0x1]
    %v1097 = vld [vmem:[%s6 + $0x10] sm:$0x1]
    %v1098 = vsel %vm99, %v1094, 0.0
    %1099 = vadd.xlane.f32.xlu0 %v1098
    %v1100 = vpop.xlane.xlu0 %1099
    %v1101 = vsel %vm99, %v1095, 0.0
    %1102 = vadd.xlane.f32.xlu0 %v1101
    %v1103 = vpop.xlane.xlu0 %1102
    %v1104 = vmul.f32 %v1100, %v184
    %v1105 = vmul.f32 %v1103, %v184
    %v1106 = vsub.f32 %v1094, %v1104
    %v1107 = vsub.f32 %v1095, %v1105
    %v1108 = vmul.f32 %v1106, %v1106
    %v1109 = vmul.f32 %v1107, %v1107
    %v1110 = vsel %vm99, %v1108, 0.0
    %1111 = vadd.xlane.f32.xlu0 %v1110
    %v1112 = vpop.xlane.xlu0 %1111
    %v1113 = vsel %vm99, %v1109, 0.0
    %1114 = vadd.xlane.f32.xlu0 %v1113
    %v1115 = vpop.xlane.xlu0 %1114
    %v1116 = vmul.f32 %v1112, %v184
    %v1117 = vmul.f32 %v1115, %v184
    %v1118 = vadd.f32 %v1116, 1e-05
    %v1119 = vadd.f32 %v1117, 1e-05
    %v1120 = vrsqrt.pop %v1118
    %v1121 = vmul.f32 %v1120, %v1118
    %v1122 = vmul.f32 %v1121, %v1120
    %v1123 = vmul.f32 0.5, %v1122
    %v1124 = vsub.f32 1.5, %v1123
    %v1125 = vmul.f32 %v1120, %v1124
    %vm1126 = vweird.f32 %v1118
    %vm1127 = vweird.f32 %v1120
    %vm1128 = vmor %vm1126, %vm1127
    %v1129 = vsel %vm1128, %v1120, %v1125
    %v1130 = vrsqrt.pop %v1119
    %v1131 = vmul.f32 %v1130, %v1119
    %v1132 = vmul.f32 %v1131, %v1130
    %v1133 = vmul.f32 0.5, %v1132
    %v1134 = vsub.f32 1.5, %v1133
    %v1135 = vmul.f32 %v1130, %v1134
    %vm1136 = vweird.f32 %v1119
    %vm1137 = vweird.f32 %v1130
    %vm1138 = vmor %vm1136, %vm1137
    %v1139 = vsel %vm1138, %v1130, %v1135
    %v1140 = vmul.f32 %v1106, %v1129
    %v1141 = vmul.f32 %v1107, %v1139
    %v1142 = vperm.slane %v1096, 0
    %v1143 = vmul.f32 %v1140, %v1142
    %v1144 = vmul.f32 %v1141, %v1142
    %v1145 = vperm.slane %v1097, 0
    %v1146 = vadd.f32 %v1143, %v1145
    %v1147 = vadd.f32 %v1144, %v1145
    %v1148 = vmul.f32 %v1146, 0.5
    %v1149 = vmul.f32 %v1147, 0.5
    %v1150 = vmul.f32 %v1146, 0.044715
    %v1151 = vmul.f32 %v1147, 0.044715
    %v1152 = vmul.f32 %v1150, %v1146
    %v1153 = vmul.f32 %v1151, %v1147
    %v1154 = vmul.f32 %v1152, %v1146
    %v1155 = vmul.f32 %v1153, %v1147
    %v1156 = vadd.f32 %v1146, %v1154
    %v1157 = vadd.f32 %v1147, %v1155
    %v1158 = vmul.f32 %v1156, 0.7978846
    %v1159 = vmul.f32 %v1157, 0.7978846
    %v1160 = vtanh.pop %v1158
    %v1161 = vtanh.pop %v1159
    %v1162 = vadd.f32 %v1160, 1.0
    %v1163 = vadd.f32 %v1161, 1.0
    %v1164 = vmul.f32 %v1148, %v1162
    %v1165 = vmul.f32 %v1149, %v1163
    %v1166 = vld [vmem:[#allocation2 + $0x120] sm:$0xff]
    %v1167 = vld [vmem:[#allocation2 + $0x128] sm:$0xff]
    %v1168 = vld [vmem:[#allocation2 + $0x130] sm:$0xff]
    %v1169 = vld [vmem:[#allocation2 + $0x138] sm:$0xff]
    %v1170 = vld [vmem:[%s6 + $0x11] sm:$0x1]
    %v1171 = vld [vmem:[#allocation2 + $0x140] sm:$0xff]
    %v1172 = vld [vmem:[#allocation2 + $0x148] sm:$0xff]
    %v1173 = vld [vmem:[#allocation2 + $0x150] sm:$0xff]
    %v1174 = vld [vmem:[#allocation2 + $0x158] sm:$0xff]
    %v1175 = vld [vmem:[%s6 + $0x12] sm:$0x1]
    %v1176 = vperm.slane %v1170, 0
    %v1178 = vsel %vm99, %v1164, 0
    %v1181 = vsel %vm99, %v1165, 0
    %1183 = vmatpush.msra.mxu0 0.0
    %1184 = vmatpush.msra.mxu0 0.0
    %1185 = vmatpush.msra.mxu0 0.0
    %1186 = vmatpush.msra.mxu0 0.0
    %1187 = vmatpush.msra.mxu0 0.0
    %1188 = vmatpush.msra.mxu0 0.0
    %1189 = vmatpush.msra.mxu0 0.0
    %1190 = vmatpush.msra.mxu0 0.0
    %1191 = vmatpush.msra.mxu0 0.0
    %1192 = vmatpush.msra.mxu0 0.0
    %1193 = vmatpush.msra.mxu0 0.0
    %1194 = vmatpush.msra.mxu0 0.0
    %1195 = vmatpush.msra.mxu0 %v1169
    %1196 = vmatpush.msra.mxu0 %v1168
    %1197 = vmatpush.msra.mxu0 %v1167
    %1198 = vmatpush.msra.mxu0 %v1166
    %1199 = vmatmul.f32.gmra.mxu0 %v1178
    %v1200 = vpop.f32.mrf.mxu0
    %v1201 = vadd.f32 %v1176, %v1200
    %1202 = vmatmul.f32.gmra.mxu0 %v1181
    %v1203 = vpop.f32.mrf.mxu0
    %v1204 = vadd.f32 %v1176, %v1203
    %1205 = vdwg.mxu0
    %v1206 = vmul.f32 %v1201, 0.35355338
    %v1207 = vmul.f32 %v1204, 0.35355338
    %1210 = vrot.lane.b32.xlu0 %v1201, 96
    %v1211 = vpop.permute.xlu0 %1210
    %1212 = vrot.lane.b32.xlu0 %v1204, 96
    %v1213 = vpop.permute.xlu0 %1212
    %v1215 = vsel %vm295, %v1206, 0
    %v1218 = vsel %vm295, %v1207, 0
    %v1220 = vsel %vm295, %v1211, 0
    %v1222 = vsel %vm295, %v1213, 0
    %1224 = vmatpush.xpose.msra.mxu0 0.0
    %1225 = vmatpush.xpose.msra.mxu0 0.0
    %1226 = vmatpush.xpose.msra.mxu0 0.0
    %1227 = vmatpush.xpose.msra.mxu0 0.0
    %1228 = vmatpush.xpose.msra.mxu0 0.0
    %1229 = vmatpush.xpose.msra.mxu0 0.0
    %1230 = vmatpush.xpose.msra.mxu0 0.0
    %1231 = vmatpush.xpose.msra.mxu0 0.0
    %1232 = vmatpush.xpose.msra.mxu0 0.0
    %1233 = vmatpush.xpose.msra.mxu0 0.0
    %1234 = vmatpush.xpose.msra.mxu0 0.0
    %1235 = vmatpush.xpose.msra.mxu0 0.0
    %1236 = vmatpush.xpose.msra.mxu0 0.0
    %1237 = vmatpush.xpose.msra.mxu0 0.0
    %1238 = vmatpush.xpose.msra.mxu0 %v1222
    %1239 = vmatpush.xpose.msra.mxu0 %v1220
    %1240 = vmatmul.f32.gmra.mxu0 %v1215
    %v1241 = vpop.f32.mrf.mxu0
    %v1242 = vadd.f32 %v49, %v1241
    %1243 = vmatmul.f32.gmra.mxu0 %v1218
    %v1244 = vpop.f32.mrf.mxu0
    %v1245 = vadd.f32 %v50, %v1244
    %1246 = vdwg.mxu0
    %v1247 = vsel %vm329, %v1242, -inf
    %1248 = vmax.xlane.f32.xlu0 %v1247
    %v1249 = vpop.xlane.xlu0 %1248
    %v1250 = vsel %vm329, %v1245, -inf
    %1251 = vmax.xlane.f32.xlu0 %v1250
    %v1252 = vpop.xlane.xlu0 %1251
    %v1253 = vsub.f32 %v1242, %v1249
    %v1254 = vsub.f32 %v1245, %v1252
    %v1255 = vmul.f32 %v1253, 1.442695
    %v1256 = vpow.pop %v1255
    %v1257 = vmul.f32 %v1254, 1.442695
    %v1258 = vpow.pop %v1257
    %v1259 = vsel %vm329, %v1256, 0.0
    %1260 = vadd.xlane.f32.xlu0 %v1259
    %v1261 = vpop.xlane.xlu0 %1260
    %v1262 = vsel %vm329, %v1258, 0.0
    %1263 = vadd.xlane.f32.xlu0 %v1262
    %v1264 = vpop.xlane.xlu0 %1263
    %v1265 = vrcp.pop %v1261
    %v1266 = vmul.f32 %v1261, %v1265
    %v1267 = vsub.f32 1.0, %v1266
    %v1268 = vmul.f32 %v1265, %v1267
    %v1269 = vadd.f32 %v1265, %v1268
    %vm1270 = vweird.f32 %v1261
    %vm1271 = vweird.f32 %v1265
    %vm1272 = vmor %vm1270, %vm1271
    %v1273 = vsel %vm1272, %v1265, %v1269
    %v1274 = vand.u32 2147483647, %v1261
    %vm1275 = vcmp.eq.f32.partialorder %v1274, 8.507059e+37
    %v1276 = vand.u32 %v1261, 2147483648
    %v1277 = vor.u32 1.1754944e-38, %v1276
    %v1278 = vsel %vm1275, %v1277, %v1273
    %v1279 = vmul.f32 %v1256, %v1278
    %v1280 = vrcp.pop %v1264
    %v1281 = vmul.f32 %v1264, %v1280
    %v1282 = vsub.f32 1.0, %v1281
    %v1283 = vmul.f32 %v1280, %v1282
    %v1284 = vadd.f32 %v1280, %v1283
    %vm1285 = vweird.f32 %v1264
    %vm1286 = vweird.f32 %v1280
    %vm1287 = vmor %vm1285, %vm1286
    %v1288 = vsel %vm1287, %v1280, %v1284
    %v1289 = vand.u32 2147483647, %v1264
    %vm1290 = vcmp.eq.f32.partialorder %v1289, 8.507059e+37
    %v1291 = vand.u32 %v1264, 2147483648
    %v1292 = vor.u32 1.1754944e-38, %v1291
    %v1293 = vsel %vm1290, %v1292, %v1288
    %v1294 = vmul.f32 %v1258, %v1293
    %1295 = vrot.lane.b32.xlu0 %v1201, 64
    %v1296 = vpop.permute.xlu0 %1295
    %1297 = vrot.lane.b32.xlu0 %v1204, 64
    %v1298 = vpop.permute.xlu0 %1297
    %v1302 = vsel %vm329, %v1279, 0
    %v1305 = vsel %vm329, %v1294, 0
    %1307 = vmatpush.msra.mxu0 0.0
    %1308 = vmatpush.msra.mxu0 0.0
    %1309 = vmatpush.msra.mxu0 0.0
    %1310 = vmatpush.msra.mxu0 0.0
    %1311 = vmatpush.msra.mxu0 0.0
    %1312 = vmatpush.msra.mxu0 0.0
    %1313 = vmatpush.msra.mxu0 0.0
    %1314 = vmatpush.msra.mxu0 0.0
    %1315 = vmatpush.msra.mxu0 0.0
    %1316 = vmatpush.msra.mxu0 0.0
    %1317 = vmatpush.msra.mxu0 0.0
    %1318 = vmatpush.msra.mxu0 0.0
    %1319 = vmatpush.msra.mxu0 0.0
    %1320 = vmatpush.msra.mxu0 0.0
    %1321 = vmatpush.msra.mxu0 %v1298
    %1322 = vmatpush.msra.mxu0 %v1296
    %1323 = vmatmul.f32.gmra.mxu0 %v1302
    %v1324 = vpop.f32.mrf.mxu0
    %v1325 = vadd.f32 0.0, %v1324
    %1326 = vmatmul.f32.gmra.mxu0 %v1305
    %v1327 = vpop.f32.mrf.mxu0
    %v1328 = vadd.f32 0.0, %v1327
    %1329 = vdwg.mxu0
    %1330 = vrot.lane.b32.xlu0 %v1206, 120
    %v1331 = vpop.permute.xlu0 %1330
    %1332 = vrot.lane.b32.xlu0 %v1207, 120
    %v1333 = vpop.permute.xlu0 %1332
    %1334 = vrot.lane.b32.xlu0 %v1201, 88
    %v1335 = vpop.permute.xlu0 %1334
    %1336 = vrot.lane.b32.xlu0 %v1204, 88
    %v1337 = vpop.permute.xlu0 %1336
    %v1338 = vsel %vm295, %v1331, 0
    %v1340 = vsel %vm295, %v1333, 0
    %v1342 = vsel %vm295, %v1335, 0
    %v1344 = vsel %vm295, %v1337, 0
    %1346 = vmatpush.xpose.msra.mxu0 0.0
    %1347 = vmatpush.xpose.msra.mxu0 0.0
    %1348 = vmatpush.xpose.msra.mxu0 0.0
    %1349 = vmatpush.xpose.msra.mxu0 0.0
    %1350 = vmatpush.xpose.msra.mxu0 0.0
    %1351 = vmatpush.xpose.msra.mxu0 0.0
    %1352 = vmatpush.xpose.msra.mxu0 0.0
    %1353 = vmatpush.xpose.msra.mxu0 0.0
    %1354 = vmatpush.xpose.msra.mxu0 0.0
    %1355 = vmatpush.xpose.msra.mxu0 0.0
    %1356 = vmatpush.xpose.msra.mxu0 0.0
    %1357 = vmatpush.xpose.msra.mxu0 0.0
    %1358 = vmatpush.xpose.msra.mxu0 0.0
    %1359 = vmatpush.xpose.msra.mxu0 0.0
    %1360 = vmatpush.xpose.msra.mxu0 %v1344
    %1361 = vmatpush.xpose.msra.mxu0 %v1342
    %1362 = vmatmul.f32.gmra.mxu0 %v1338
    %v1363 = vpop.f32.mrf.mxu0
    %v1364 = vadd.f32 %v49, %v1363
    %1365 = vmatmul.f32.gmra.mxu0 %v1340
    %v1366 = vpop.f32.mrf.mxu0
    %v1367 = vadd.f32 %v50, %v1366
    %1368 = vdwg.mxu0
    %v1369 = vsel %vm329, %v1364, -inf
    %1370 = vmax.xlane.f32.xlu0 %v1369
    %v1371 = vpop.xlane.xlu0 %1370
    %v1372 = vsel %vm329, %v1367, -inf
    %1373 = vmax.xlane.f32.xlu0 %v1372
    %v1374 = vpop.xlane.xlu0 %1373
    %v1375 = vsub.f32 %v1364, %v1371
    %v1376 = vsub.f32 %v1367, %v1374
    %v1377 = vmul.f32 %v1375, 1.442695
    %v1378 = vpow.pop %v1377
    %v1379 = vmul.f32 %v1376, 1.442695
    %v1380 = vpow.pop %v1379
    %v1381 = vsel %vm329, %v1378, 0.0
    %1382 = vadd.xlane.f32.xlu0 %v1381
    %v1383 = vpop.xlane.xlu0 %1382
    %v1384 = vsel %vm329, %v1380, 0.0
    %1385 = vadd.xlane.f32.xlu0 %v1384
    %v1386 = vpop.xlane.xlu0 %1385
    %v1387 = vrcp.pop %v1383
    %v1388 = vmul.f32 %v1383, %v1387
    %v1389 = vsub.f32 1.0, %v1388
    %v1390 = vmul.f32 %v1387, %v1389
    %v1391 = vadd.f32 %v1387, %v1390
    %vm1392 = vweird.f32 %v1383
    %vm1393 = vweird.f32 %v1387
    %vm1394 = vmor %vm1392, %vm1393
    %v1395 = vsel %vm1394, %v1387, %v1391
    %v1396 = vand.u32 2147483647, %v1383
    %vm1397 = vcmp.eq.f32.partialorder %v1396, 8.507059e+37
    %v1398 = vand.u32 %v1383, 2147483648
    %v1399 = vor.u32 1.1754944e-38, %v1398
    %v1400 = vsel %vm1397, %v1399, %v1395
    %v1401 = vmul.f32 %v1378, %v1400
    %v1402 = vrcp.pop %v1386
    %v1403 = vmul.f32 %v1386, %v1402
    %v1404 = vsub.f32 1.0, %v1403
    %v1405 = vmul.f32 %v1402, %v1404
    %v1406 = vadd.f32 %v1402, %v1405
    %vm1407 = vweird.f32 %v1386
    %vm1408 = vweird.f32 %v1402
    %vm1409 = vmor %vm1407, %vm1408
    %v1410 = vsel %vm1409, %v1402, %v1406
    %v1411 = vand.u32 2147483647, %v1386
    %vm1412 = vcmp.eq.f32.partialorder %v1411, 8.507059e+37
    %v1413 = vand.u32 %v1386, 2147483648
    %v1414 = vor.u32 1.1754944e-38, %v1413
    %v1415 = vsel %vm1412, %v1414, %v1410
    %v1416 = vmul.f32 %v1380, %v1415
    %1417 = vrot.lane.b32.xlu0 %v1201, 56
    %v1418 = vpop.permute.xlu0 %1417
    %1419 = vrot.lane.b32.xlu0 %v1204, 56
    %v1420 = vpop.permute.xlu0 %1419
    %v1424 = vsel %vm329, %v1401, 0
    %v1427 = vsel %vm329, %v1416, 0
    %1429 = vmatpush.msra.mxu0 0.0
    %1430 = vmatpush.msra.mxu0 0.0
    %1431 = vmatpush.msra.mxu0 0.0
    %1432 = vmatpush.msra.mxu0 0.0
    %1433 = vmatpush.msra.mxu0 0.0
    %1434 = vmatpush.msra.mxu0 0.0
    %1435 = vmatpush.msra.mxu0 0.0
    %1436 = vmatpush.msra.mxu0 0.0
    %1437 = vmatpush.msra.mxu0 0.0
    %1438 = vmatpush.msra.mxu0 0.0
    %1439 = vmatpush.msra.mxu0 0.0
    %1440 = vmatpush.msra.mxu0 0.0
    %1441 = vmatpush.msra.mxu0 0.0
    %1442 = vmatpush.msra.mxu0 0.0
    %1443 = vmatpush.msra.mxu0 %v1420
    %1444 = vmatpush.msra.mxu0 %v1418
    %1445 = vmatmul.f32.gmra.mxu0 %v1424
    %v1446 = vpop.f32.mrf.mxu0
    %v1447 = vadd.f32 0.0, %v1446
    %1448 = vmatmul.f32.gmra.mxu0 %v1427
    %v1449 = vpop.f32.mrf.mxu0
    %v1450 = vadd.f32 0.0, %v1449
    %1451 = vdwg.mxu0
    %1452 = vrot.lane.b32.xlu0 %v1206, 112
    %v1453 = vpop.permute.xlu0 %1452
    %1454 = vrot.lane.b32.xlu0 %v1207, 112
    %v1455 = vpop.permute.xlu0 %1454
    %1456 = vrot.lane.b32.xlu0 %v1201, 80
    %v1457 = vpop.permute.xlu0 %1456
    %1458 = vrot.lane.b32.xlu0 %v1204, 80
    %v1459 = vpop.permute.xlu0 %1458
    %v1460 = vsel %vm295, %v1453, 0
    %v1462 = vsel %vm295, %v1455, 0
    %v1464 = vsel %vm295, %v1457, 0
    %v1466 = vsel %vm295, %v1459, 0
    %1468 = vmatpush.xpose.msra.mxu0 0.0
    %1469 = vmatpush.xpose.msra.mxu0 0.0
    %1470 = vmatpush.xpose.msra.mxu0 0.0
    %1471 = vmatpush.xpose.msra.mxu0 0.0
    %1472 = vmatpush.xpose.msra.mxu0 0.0
    %1473 = vmatpush.xpose.msra.mxu0 0.0
    %1474 = vmatpush.xpose.msra.mxu0 0.0
    %1475 = vmatpush.xpose.msra.mxu0 0.0
    %1476 = vmatpush.xpose.msra.mxu0 0.0
    %1477 = vmatpush.xpose.msra.mxu0 0.0
    %1478 = vmatpush.xpose.msra.mxu0 0.0
    %1479 = vmatpush.xpose.msra.mxu0 0.0
    %1480 = vmatpush.xpose.msra.mxu0 0.0
    %1481 = vmatpush.xpose.msra.mxu0 0.0
    %1482 = vmatpush.xpose.msra.mxu0 %v1466
    %1483 = vmatpush.xpose.msra.mxu0 %v1464
    %1484 = vmatmul.f32.gmra.mxu0 %v1460
    %v1485 = vpop.f32.mrf.mxu0
    %v1486 = vadd.f32 %v49, %v1485
    %1487 = vmatmul.f32.gmra.mxu0 %v1462
    %v1488 = vpop.f32.mrf.mxu0
    %v1489 = vadd.f32 %v50, %v1488
    %1490 = vdwg.mxu0
    %v1491 = vsel %vm329, %v1486, -inf
    %1492 = vmax.xlane.f32.xlu0 %v1491
    %v1493 = vpop.xlane.xlu0 %1492
    %v1494 = vsel %vm329, %v1489, -inf
    %1495 = vmax.xlane.f32.xlu0 %v1494
    %v1496 = vpop.xlane.xlu0 %1495
    %v1497 = vsub.f32 %v1486, %v1493
    %v1498 = vsub.f32 %v1489, %v1496
    %v1499 = vmul.f32 %v1497, 1.442695
    %v1500 = vpow.pop %v1499
    %v1501 = vmul.f32 %v1498, 1.442695
    %v1502 = vpow.pop %v1501
    %v1503 = vsel %vm329, %v1500, 0.0
    %1504 = vadd.xlane.f32.xlu0 %v1503
    %v1505 = vpop.xlane.xlu0 %1504
    %v1506 = vsel %vm329, %v1502, 0.0
    %1507 = vadd.xlane.f32.xlu0 %v1506
    %v1508 = vpop.xlane.xlu0 %1507
    %v1509 = vrcp.pop %v1505
    %v1510 = vmul.f32 %v1505, %v1509
    %v1511 = vsub.f32 1.0, %v1510
    %v1512 = vmul.f32 %v1509, %v1511
    %v1513 = vadd.f32 %v1509, %v1512
    %vm1514 = vweird.f32 %v1505
    %vm1515 = vweird.f32 %v1509
    %vm1516 = vmor %vm1514, %vm1515
    %v1517 = vsel %vm1516, %v1509, %v1513
    %v1518 = vand.u32 2147483647, %v1505
    %vm1519 = vcmp.eq.f32.partialorder %v1518, 8.507059e+37
    %v1520 = vand.u32 %v1505, 2147483648
    %v1521 = vor.u32 1.1754944e-38, %v1520
    %v1522 = vsel %vm1519, %v1521, %v1517
    %v1523 = vmul.f32 %v1500, %v1522
    %v1524 = vrcp.pop %v1508
    %v1525 = vmul.f32 %v1508, %v1524
    %v1526 = vsub.f32 1.0, %v1525
    %v1527 = vmul.f32 %v1524, %v1526
    %v1528 = vadd.f32 %v1524, %v1527
    %vm1529 = vweird.f32 %v1508
    %vm1530 = vweird.f32 %v1524
    %vm1531 = vmor %vm1529, %vm1530
    %v1532 = vsel %vm1531, %v1524, %v1528
    %v1533 = vand.u32 2147483647, %v1508
    %vm1534 = vcmp.eq.f32.partialorder %v1533, 8.507059e+37
    %v1535 = vand.u32 %v1508, 2147483648
    %v1536 = vor.u32 1.1754944e-38, %v1535
    %v1537 = vsel %vm1534, %v1536, %v1532
    %v1538 = vmul.f32 %v1502, %v1537
    %1539 = vrot.lane.b32.xlu0 %v1201, 48
    %v1540 = vpop.permute.xlu0 %1539
    %1541 = vrot.lane.b32.xlu0 %v1204, 48
    %v1542 = vpop.permute.xlu0 %1541
    %v1546 = vsel %vm329, %v1523, 0
    %v1549 = vsel %vm329, %v1538, 0
    %1551 = vmatpush.msra.mxu0 0.0
    %1552 = vmatpush.msra.mxu0 0.0
    %1553 = vmatpush.msra.mxu0 0.0
    %1554 = vmatpush.msra.mxu0 0.0
    %1555 = vmatpush.msra.mxu0 0.0
    %1556 = vmatpush.msra.mxu0 0.0
    %1557 = vmatpush.msra.mxu0 0.0
    %1558 = vmatpush.msra.mxu0 0.0
    %1559 = vmatpush.msra.mxu0 0.0
    %1560 = vmatpush.msra.mxu0 0.0
    %1561 = vmatpush.msra.mxu0 0.0
    %1562 = vmatpush.msra.mxu0 0.0
    %1563 = vmatpush.msra.mxu0 0.0
    %1564 = vmatpush.msra.mxu0 0.0
    %1565 = vmatpush.msra.mxu0 %v1542
    %1566 = vmatpush.msra.mxu0 %v1540
    %1567 = vmatmul.f32.gmra.mxu0 %v1546
    %v1568 = vpop.f32.mrf.mxu0
    %v1569 = vadd.f32 0.0, %v1568
    %1570 = vmatmul.f32.gmra.mxu0 %v1549
    %v1571 = vpop.f32.mrf.mxu0
    %v1572 = vadd.f32 0.0, %v1571
    %1573 = vdwg.mxu0
    %1574 = vrot.lane.b32.xlu0 %v1206, 104
    %v1575 = vpop.permute.xlu0 %1574
    %1576 = vrot.lane.b32.xlu0 %v1207, 104
    %v1577 = vpop.permute.xlu0 %1576
    %1578 = vrot.lane.b32.xlu0 %v1201, 72
    %v1579 = vpop.permute.xlu0 %1578
    %1580 = vrot.lane.b32.xlu0 %v1204, 72
    %v1581 = vpop.permute.xlu0 %1580
    %v1582 = vsel %vm295, %v1575, 0
    %v1584 = vsel %vm295, %v1577, 0
    %v1586 = vsel %vm295, %v1579, 0
    %v1588 = vsel %vm295, %v1581, 0
    %1590 = vmatpush.xpose.msra.mxu0 0.0
    %1591 = vmatpush.xpose.msra.mxu0 0.0
    %1592 = vmatpush.xpose.msra.mxu0 0.0
    %1593 = vmatpush.xpose.msra.mxu0 0.0
    %1594 = vmatpush.xpose.msra.mxu0 0.0
    %1595 = vmatpush.xpose.msra.mxu0 0.0
    %1596 = vmatpush.xpose.msra.mxu0 0.0
    %1597 = vmatpush.xpose.msra.mxu0 0.0
    %1598 = vmatpush.xpose.msra.mxu0 0.0
    %1599 = vmatpush.xpose.msra.mxu0 0.0
    %1600 = vmatpush.xpose.msra.mxu0 0.0
    %1601 = vmatpush.xpose.msra.mxu0 0.0
    %1602 = vmatpush.xpose.msra.mxu0 0.0
    %1603 = vmatpush.xpose.msra.mxu0 0.0
    %1604 = vmatpush.xpose.msra.mxu0 %v1588
    %1605 = vmatpush.xpose.msra.mxu0 %v1586
    %1606 = vmatmul.f32.gmra.mxu0 %v1582
    %v1607 = vpop.f32.mrf.mxu0
    %v1608 = vadd.f32 %v49, %v1607
    %1609 = vmatmul.f32.gmra.mxu0 %v1584
    %v1610 = vpop.f32.mrf.mxu0
    %v1611 = vadd.f32 %v50, %v1610
    %1612 = vdwg.mxu0
    %v1613 = vsel %vm329, %v1608, -inf
    %1614 = vmax.xlane.f32.xlu0 %v1613
    %v1615 = vpop.xlane.xlu0 %1614
    %v1616 = vsel %vm329, %v1611, -inf
    %1617 = vmax.xlane.f32.xlu0 %v1616
    %v1618 = vpop.xlane.xlu0 %1617
    %v1619 = vsub.f32 %v1608, %v1615
    %v1620 = vsub.f32 %v1611, %v1618
    %v1621 = vmul.f32 %v1619, 1.442695
    %v1622 = vpow.pop %v1621
    %v1623 = vmul.f32 %v1620, 1.442695
    %v1624 = vpow.pop %v1623
    %v1625 = vsel %vm329, %v1622, 0.0
    %1626 = vadd.xlane.f32.xlu0 %v1625
    %v1627 = vpop.xlane.xlu0 %1626
    %v1628 = vsel %vm329, %v1624, 0.0
    %1629 = vadd.xlane.f32.xlu0 %v1628
    %v1630 = vpop.xlane.xlu0 %1629
    %v1631 = vrcp.pop %v1627
    %v1632 = vmul.f32 %v1627, %v1631
    %v1633 = vsub.f32 1.0, %v1632
    %v1634 = vmul.f32 %v1631, %v1633
    %v1635 = vadd.f32 %v1631, %v1634
    %vm1636 = vweird.f32 %v1627
    %vm1637 = vweird.f32 %v1631
    %vm1638 = vmor %vm1636, %vm1637
    %v1639 = vsel %vm1638, %v1631, %v1635
    %v1640 = vand.u32 2147483647, %v1627
    %vm1641 = vcmp.eq.f32.partialorder %v1640, 8.507059e+37
    %v1642 = vand.u32 %v1627, 2147483648
    %v1643 = vor.u32 1.1754944e-38, %v1642
    %v1644 = vsel %vm1641, %v1643, %v1639
    %v1645 = vmul.f32 %v1622, %v1644
    %v1646 = vrcp.pop %v1630
    %v1647 = vmul.f32 %v1630, %v1646
    %v1648 = vsub.f32 1.0, %v1647
    %v1649 = vmul.f32 %v1646, %v1648
    %v1650 = vadd.f32 %v1646, %v1649
    %vm1651 = vweird.f32 %v1630
    %vm1652 = vweird.f32 %v1646
    %vm1653 = vmor %vm1651, %vm1652
    %v1654 = vsel %vm1653, %v1646, %v1650
    %v1655 = vand.u32 2147483647, %v1630
    %vm1656 = vcmp.eq.f32.partialorder %v1655, 8.507059e+37
    %v1657 = vand.u32 %v1630, 2147483648
    %v1658 = vor.u32 1.1754944e-38, %v1657
    %v1659 = vsel %vm1656, %v1658, %v1654
    %v1660 = vmul.f32 %v1624, %v1659
    %1661 = vrot.lane.b32.xlu0 %v1201, 40
    %v1662 = vpop.permute.xlu0 %1661
    %1663 = vrot.lane.b32.xlu0 %v1204, 40
    %v1664 = vpop.permute.xlu0 %1663
    %v1668 = vsel %vm329, %v1645, 0
    %v1671 = vsel %vm329, %v1660, 0
    %1673 = vmatpush.msra.mxu0 0.0
    %1674 = vmatpush.msra.mxu0 0.0
    %1675 = vmatpush.msra.mxu0 0.0
    %1676 = vmatpush.msra.mxu0 0.0
    %1677 = vmatpush.msra.mxu0 0.0
    %1678 = vmatpush.msra.mxu0 0.0
    %1679 = vmatpush.msra.mxu0 0.0
    %1680 = vmatpush.msra.mxu0 0.0
    %1681 = vmatpush.msra.mxu0 0.0
    %1682 = vmatpush.msra.mxu0 0.0
    %1683 = vmatpush.msra.mxu0 0.0
    %1684 = vmatpush.msra.mxu0 0.0
    %1685 = vmatpush.msra.mxu0 0.0
    %1686 = vmatpush.msra.mxu0 0.0
    %1687 = vmatpush.msra.mxu0 %v1664
    %1688 = vmatpush.msra.mxu0 %v1662
    %1689 = vmatmul.f32.gmra.mxu0 %v1668
    %v1690 = vpop.f32.mrf.mxu0
    %v1691 = vadd.f32 0.0, %v1690
    %1692 = vmatmul.f32.gmra.mxu0 %v1671
    %v1693 = vpop.f32.mrf.mxu0
    %v1694 = vadd.f32 0.0, %v1693
    %1695 = vdwg.mxu0
    %1698 = vrot.lane.b32.xlu0 %v1447, 8
    %v1699 = vpop.permute.xlu0 %1698
    %1700 = vrot.lane.b32.xlu0 %v1450, 8
    %v1701 = vpop.permute.xlu0 %1700
    %1706 = vrot.lane.b32.xlu0 %v1569, 16
    %v1707 = vpop.permute.xlu0 %1706
    %1708 = vrot.lane.b32.xlu0 %v1572, 16
    %v1709 = vpop.permute.xlu0 %1708
    %1714 = vrot.lane.b32.xlu0 %v1691, 24
    %v1715 = vpop.permute.xlu0 %1714
    %1716 = vrot.lane.b32.xlu0 %v1694, 24
    %v1717 = vpop.permute.xlu0 %1716
    %v1720 = vsel %vm295, %v1325, %v1699
    %v1721 = vsel %vm295, %v1328, %v1701
    %v1722 = vsel %vm329, %v1720, %v1707
    %v1723 = vsel %vm329, %v1721, %v1709
    %v1724 = vsel %vm807, %v1722, %v1715
    %v1725 = vsel %vm807, %v1723, %v1717
    %v1726 = vperm.slane %v1175, 0
    %v1728 = vsel %vm99, %v1724, 0
    %v1731 = vsel %vm99, %v1725, 0
    %1733 = vmatpush.msra.mxu0 0.0
    %1734 = vmatpush.msra.mxu0 0.0
    %1735 = vmatpush.msra.mxu0 0.0
    %1736 = vmatpush.msra.mxu0 0.0
    %1737 = vmatpush.msra.mxu0 0.0
    %1738 = vmatpush.msra.mxu0 0.0
    %1739 = vmatpush.msra.mxu0 0.0
    %1740 = vmatpush.msra.mxu0 0.0
    %1741 = vmatpush.msra.mxu0 0.0
    %1742 = vmatpush.msra.mxu0 0.0
    %1743 = vmatpush.msra.mxu0 0.0
    %1744 = vmatpush.msra.mxu0 0.0
    %1745 = vmatpush.msra.mxu0 %v1174
    %1746 = vmatpush.msra.mxu0 %v1173
    %1747 = vmatpush.msra.mxu0 %v1172
    %1748 = vmatpush.msra.mxu0 %v1171
    %1749 = vmatmul.f32.gmra.mxu0 %v1728
    %v1750 = vpop.f32.mrf.mxu0
    %v1751 = vadd.f32 %v1726, %v1750
    %1752 = vmatmul.f32.gmra.mxu0 %v1731
    %v1753 = vpop.f32.mrf.mxu0
    %v1754 = vadd.f32 %v1726, %v1753
    %1755 = vdwg.mxu0
    %v1756 = vadd.f32 %v1164, %v1751
    %v1757 = vadd.f32 %v1165, %v1754
    %v1758 = vld [vmem:[%s6 + $0x15] sm:$0x1]
    %v1759 = vld [vmem:[%s6 + $0x16] sm:$0x1]
    %v1760 = vsel %vm99, %v1756, 0.0
    %1761 = vadd.xlane.f32.xlu0 %v1760
    %v1762 = vpop.xlane.xlu0 %1761
    %v1763 = vsel %vm99, %v1757, 0.0
    %1764 = vadd.xlane.f32.xlu0 %v1763
    %v1765 = vpop.xlane.xlu0 %1764
    %v1766 = vmul.f32 %v1762, %v184
    %v1767 = vmul.f32 %v1765, %v184
    %v1768 = vsub.f32 %v1756, %v1766
    %v1769 = vsub.f32 %v1757, %v1767
    %v1770 = vmul.f32 %v1768, %v1768
    %v1771 = vmul.f32 %v1769, %v1769
    %v1772 = vsel %vm99, %v1770, 0.0
    %1773 = vadd.xlane.f32.xlu0 %v1772
    %v1774 = vpop.xlane.xlu0 %1773
    %v1775 = vsel %vm99, %v1771, 0.0
    %1776 = vadd.xlane.f32.xlu0 %v1775
    %v1777 = vpop.xlane.xlu0 %1776
    %v1778 = vmul.f32 %v1774, %v184
    %v1779 = vmul.f32 %v1777, %v184
    %v1780 = vadd.f32 %v1778, 1e-05
    %v1781 = vadd.f32 %v1779, 1e-05
    %v1782 = vrsqrt.pop %v1780
    %v1783 = vmul.f32 %v1782, %v1780
    %v1784 = vmul.f32 %v1783, %v1782
    %v1785 = vmul.f32 0.5, %v1784
    %v1786 = vsub.f32 1.5, %v1785
    %v1787 = vmul.f32 %v1782, %v1786
    %vm1788 = vweird.f32 %v1780
    %vm1789 = vweird.f32 %v1782
    %vm1790 = vmor %vm1788, %vm1789
    %v1791 = vsel %vm1790, %v1782, %v1787
    %v1792 = vrsqrt.pop %v1781
    %v1793 = vmul.f32 %v1792, %v1781
    %v1794 = vmul.f32 %v1793, %v1792
    %v1795 = vmul.f32 0.5, %v1794
    %v1796 = vsub.f32 1.5, %v1795
    %v1797 = vmul.f32 %v1792, %v1796
    %vm1798 = vweird.f32 %v1781
    %vm1799 = vweird.f32 %v1792
    %vm1800 = vmor %vm1798, %vm1799
    %v1801 = vsel %vm1800, %v1792, %v1797
    %v1802 = vmul.f32 %v1768, %v1791
    %v1803 = vmul.f32 %v1769, %v1801
    %v1804 = vperm.slane %v1758, 0
    %v1805 = vmul.f32 %v1802, %v1804
    %v1806 = vmul.f32 %v1803, %v1804
    %v1807 = vperm.slane %v1759, 0
    %v1808 = vadd.f32 %v1805, %v1807
    %v1809 = vadd.f32 %v1806, %v1807
    %v1810 = vld [vmem:[#allocation2 + $0x160] sm:$0xff]
    %v1811 = vld [vmem:[#allocation2 + $0x168] sm:$0xff]
    %v1812 = vld [vmem:[#allocation2 + $0x170] sm:$0xff]
    %v1813 = vld [vmem:[#allocation2 + $0x178] sm:$0xff]
    %v1814 = vld [vmem:[%s6 + $0x13] sm:$0x1]
    %v1815 = vperm.slane %v1814, 0
    %v1817 = vsel %vm99, %v1808, 0
    %v1820 = vsel %vm99, %v1809, 0
    %1822 = vmatpush.msra.mxu0 0.0
    %1823 = vmatpush.msra.mxu0 0.0
    %1824 = vmatpush.msra.mxu0 0.0
    %1825 = vmatpush.msra.mxu0 0.0
    %1826 = vmatpush.msra.mxu0 0.0
    %1827 = vmatpush.msra.mxu0 0.0
    %1828 = vmatpush.msra.mxu0 0.0
    %1829 = vmatpush.msra.mxu0 0.0
    %1830 = vmatpush.msra.mxu0 0.0
    %1831 = vmatpush.msra.mxu0 0.0
    %1832 = vmatpush.msra.mxu0 0.0
    %1833 = vmatpush.msra.mxu0 0.0
    %1834 = vmatpush.msra.mxu0 %v1813
    %1835 = vmatpush.msra.mxu0 %v1812
    %1836 = vmatpush.msra.mxu0 %v1811
    %1837 = vmatpush.msra.mxu0 %v1810
    %1838 = vmatmul.f32.gmra.mxu0 %v1817
    %v1839 = vpop.f32.mrf.mxu0
    %v1840 = vadd.f32 %v1815, %v1839
    %1841 = vmatmul.f32.gmra.mxu0 %v1820
    %v1842 = vpop.f32.mrf.mxu0
    %v1843 = vadd.f32 %v1815, %v1842
    %1844 = vdwg.mxu0
    %v1845 = vmax.f32 %v1840, 0.0
    %v1846 = vmax.f32 %v1843, 0.0
    %v1847 = vld [vmem:[#allocation2 + $0x180] sm:$0xff]
    %v1848 = vld [vmem:[#allocation2 + $0x188] sm:$0xff]
    %v1849 = vld [vmem:[#allocation2 + $0x190] sm:$0xff]
    %v1850 = vld [vmem:[#allocation2 + $0x198] sm:$0xff]
    %v1851 = vld [vmem:[#allocation2 + $0x1a0] sm:$0xff]
    %v1852 = vld [vmem:[#allocation2 + $0x1a8] sm:$0xff]
    %v1853 = vld [vmem:[#allocation2 + $0x1b0] sm:$0xff]
    %v1854 = vld [vmem:[#allocation2 + $0x1b8] sm:$0xff]
    %v1855 = vld [vmem:[%s6 + $0x14] sm:$0x1]
    %v1856 = vperm.slane %v1855, 0
    %v1858 = vsel %vm61, %v1845, 0
    %v1861 = vsel %vm61, %v1846, 0
    %1863 = vmatpush.msra.mxu0 0.0
    %1864 = vmatpush.msra.mxu0 0.0
    %1865 = vmatpush.msra.mxu0 0.0
    %1866 = vmatpush.msra.mxu0 0.0
    %1867 = vmatpush.msra.mxu0 0.0
    %1868 = vmatpush.msra.mxu0 0.0
    %1869 = vmatpush.msra.mxu0 0.0
    %1870 = vmatpush.msra.mxu0 0.0
    %1871 = vmatpush.msra.mxu0 %v1854
    %1872 = vmatpush.msra.mxu0 %v1853
    %1873 = vmatpush.msra.mxu0 %v1852
    %1874 = vmatpush.msra.mxu0 %v1851
    %1875 = vmatpush.msra.mxu0 %v1850
    %1876 = vmatpush.msra.mxu0 %v1849
    %1877 = vmatpush.msra.mxu0 %v1848
    %1878 = vmatpush.msra.mxu0 %v1847
    %1879 = vmatmul.f32.gmra.mxu0 %v1858
    %v1880 = vpop.f32.mrf.mxu0
    %v1881 = vadd.f32 %v1856, %v1880
    %1882 = vmatmul.f32.gmra.mxu0 %v1861
    %v1883 = vpop.f32.mrf.mxu0
    %v1884 = vadd.f32 %v1856, %v1883
    %1885 = vdwg.mxu0
    %v1886 = vadd.f32 %v1808, %v1881
    %v1887 = vadd.f32 %v1809, %v1884
    %v1888 = vld [vmem:[%s6 + $0x17] sm:$0x1]
    %v1889 = vld [vmem:[%s6 + $0x18] sm:$0x1]
    %v1890 = vsel %vm99, %v1886, 0.0
    %1891 = vadd.xlane.f32.xlu0 %v1890
    %v1892 = vpop.xlane.xlu0 %1891
    %v1893 = vsel %vm99, %v1887, 0.0
    %1894 = vadd.xlane.f32.xlu0 %v1893
    %v1895 = vpop.xlane.xlu0 %1894
    %v1896 = vmul.f32 %v1892, %v184
    %v1897 = vmul.f32 %v1895, %v184
    %v1898 = vsub.f32 %v1886, %v1896
    %v1899 = vsub.f32 %v1887, %v1897
    %v1900 = vmul.f32 %v1898, %v1898
    %v1901 = vmul.f32 %v1899, %v1899
    %v1902 = vsel %vm99, %v1900, 0.0
    %1903 = vadd.xlane.f32.xlu0 %v1902
    %v1904 = vpop.xlane.xlu0 %1903
    %v1905 = vsel %vm99, %v1901, 0.0
    %1906 = vadd.xlane.f32.xlu0 %v1905
    %v1907 = vpop.xlane.xlu0 %1906
    %v1908 = vmul.f32 %v1904, %v184
    %v1909 = vmul.f32 %v1907, %v184
    %v1910 = vadd.f32 %v1908, 1e-05
    %v1911 = vadd.f32 %v1909, 1e-05
    %v1912 = vrsqrt.pop %v1910
    %v1913 = vmul.f32 %v1912, %v1910
    %v1914 = vmul.f32 %v1913, %v1912
    %v1915 = vmul.f32 0.5, %v1914
    %v1916 = vsub.f32 1.5, %v1915
    %v1917 = vmul.f32 %v1912, %v1916
    %vm1918 = vweird.f32 %v1910
    %vm1919 = vweird.f32 %v1912
    %vm1920 = vmor %vm1918, %vm1919
    %v1921 = vsel %vm1920, %v1912, %v1917
    %v1922 = vrsqrt.pop %v1911
    %v1923 = vmul.f32 %v1922, %v1911
    %v1924 = vmul.f32 %v1923, %v1922
    %v1925 = vmul.f32 0.5, %v1924
    %v1926 = vsub.f32 1.5, %v1925
    %v1927 = vmul.f32 %v1922, %v1926
    %vm1928 = vweird.f32 %v1911
    %vm1929 = vweird.f32 %v1922
    %vm1930 = vmor %vm1928, %vm1929
    %v1931 = vsel %vm1930, %v1922, %v1927
    %v1932 = vmul.f32 %v1898, %v1921
    %v1933 = vmul.f32 %v1899, %v1931
    %v1934 = vperm.slane %v1888, 0
    %v1935 = vmul.f32 %v1932, %v1934
    %v1936 = vmul.f32 %v1933, %v1934
    %v1937 = vperm.slane %v1889, 0
    %v1938 = vadd.f32 %v1935, %v1937
    %v1939 = vadd.f32 %v1936, %v1937
    %v1940 = vld [vmem:[#allocation2 + $0x200] sm:$0xff]
    %v1941 = vld [vmem:[#allocation2 + $0x208] sm:$0xff]
    %v1942 = vld [vmem:[#allocation2 + $0x210] sm:$0xff]
    %v1943 = vld [vmem:[#allocation2 + $0x218] sm:$0xff]
    %v1944 = vld [vmem:[%s6 + $0x19] sm:$0x1]
    %v1945 = vperm.slane %v1944, 0
    %v1947 = vsel %vm99, %v43, 0
    %v1950 = vsel %vm99, %v44, 0
    %1952 = vmatpush.msra.mxu0 0.0
    %1953 = vmatpush.msra.mxu0 0.0
    %1954 = vmatpush.msra.mxu0 0.0
    %1955 = vmatpush.msra.mxu0 0.0
    %1956 = vmatpush.msra.mxu0 0.0
    %1957 = vmatpush.msra.mxu0 0.0
    %1958 = vmatpush.msra.mxu0 0.0
    %1959 = vmatpush.msra.mxu0 0.0
    %1960 = vmatpush.msra.mxu0 0.0
    %1961 = vmatpush.msra.mxu0 0.0
    %1962 = vmatpush.msra.mxu0 0.0
    %1963 = vmatpush.msra.mxu0 0.0
    %1964 = vmatpush.msra.mxu0 %v1943
    %1965 = vmatpush.msra.mxu0 %v1942
    %1966 = vmatpush.msra.mxu0 %v1941
    %1967 = vmatpush.msra.mxu0 %v1940
    %1968 = vmatmul.f32.gmra.mxu0 %v1947
    %v1969 = vpop.f32.mrf.mxu0
    %v1970 = vadd.f32 %v1945, %v1969
    %1971 = vmatmul.f32.gmra.mxu0 %v1950
    %v1972 = vpop.f32.mrf.mxu0
    %v1973 = vadd.f32 %v1945, %v1972
    %1974 = vdwg.mxu0
    %v1975 = vld [vmem:[%s6 + $0x1a] sm:$0x1]
    %v1976 = vld [vmem:[%s6 + $0x1b] sm:$0x1]
    %v1977 = vsel %vm99, %v1970, 0.0
    %1978 = vadd.xlane.f32.xlu0 %v1977
    %v1979 = vpop.xlane.xlu0 %1978
    %v1980 = vsel %vm99, %v1973, 0.0
    %1981 = vadd.xlane.f32.xlu0 %v1980
    %v1982 = vpop.xlane.xlu0 %1981
    %v1983 = vmul.f32 %v1979, %v184
    %v1984 = vmul.f32 %v1982, %v184
    %v1985 = vsub.f32 %v1970, %v1983
    %v1986 = vsub.f32 %v1973, %v1984
    %v1987 = vmul.f32 %v1985, %v1985
    %v1988 = vmul.f32 %v1986, %v1986
    %v1989 = vsel %vm99, %v1987, 0.0
    %1990 = vadd.xlane.f32.xlu0 %v1989
    %v1991 = vpop.xlane.xlu0 %1990
    %v1992 = vsel %vm99, %v1988, 0.0
    %1993 = vadd.xlane.f32.xlu0 %v1992
    %v1994 = vpop.xlane.xlu0 %1993
    %v1995 = vmul.f32 %v1991, %v184
    %v1996 = vmul.f32 %v1994, %v184
    %v1997 = vadd.f32 %v1995, 1e-05
    %v1998 = vadd.f32 %v1996, 1e-05
    %v1999 = vrsqrt.pop %v1997
    %v2000 = vmul.f32 %v1999, %v1997
    %v2001 = vmul.f32 %v2000, %v1999
    %v2002 = vmul.f32 0.5, %v2001
    %v2003 = vsub.f32 1.5, %v2002
    %v2004 = vmul.f32 %v1999, %v2003
    %vm2005 = vweird.f32 %v1997
    %vm2006 = vweird.f32 %v1999
    %vm2007 = vmor %vm2005, %vm2006
    %v2008 = vsel %vm2007, %v1999, %v2004
    %v2009 = vrsqrt.pop %v1998
    %v2010 = vmul.f32 %v2009, %v1998
    %v2011 = vmul.f32 %v2010, %v2009
    %v2012 = vmul.f32 0.5, %v2011
    %v2013 = vsub.f32 1.5, %v2012
    %v2014 = vmul.f32 %v2009, %v2013
    %vm2015 = vweird.f32 %v1998
    %vm2016 = vweird.f32 %v2009
    %vm2017 = vmor %vm2015, %vm2016
    %v2018 = vsel %vm2017, %v2009, %v2014
    %v2019 = vmul.f32 %v1985, %v2008
    %v2020 = vmul.f32 %v1986, %v2018
    %v2021 = vperm.slane %v1975, 0
    %v2022 = vmul.f32 %v2019, %v2021
    %v2023 = vmul.f32 %v2020, %v2021
    %v2024 = vperm.slane %v1976, 0
    %v2025 = vadd.f32 %v2022, %v2024
    %v2026 = vadd.f32 %v2023, %v2024
    %v2027 = vadd.f32 %v2025, %v1938
    %v2028 = vadd.f32 %v2026, %v1939
    %2029 = vst.msk [vmem:[#allocation5] sm:$0xff] %vm99, %v2027
    %2030 = vst.msk [vmem:[#allocation5 + $0x8] sm:$0xff] %vm99, %v2028
    // Predicated region
    $region34: #{_forward.1} parent=1 // pred_check
      _
    $region35: #{_forward.1} parent=1 // pred_check_branch
      %2032 = sbr.rel (0) target = $region37
    $region36: #{_forward.1} parent=1 // pred_region
      %2034 = vsyncadd [#allocation4], 0
      %s2035 = sshll.u32 [#allocation5], 4
      %s2036 = int_to_ptr.vmem [resolvable:$true] %s2035
      %s2037 = sshll.u32 %s7, 4
      %s2038 = int_to_ptr.hbm [resolvable:$true] %s2037
      %2043 = dma.vmem_to_hbm [thread:$0]  %s2036, 256, %s2038, [#allocation4], 128, 128, 8
    $region37: #{_forward.1} parent=1 // pred_fallthru
      _
    // Predicated region
    $region38: #{_forward.1} parent=1 // pred_check
      _
    $region39: #{_forward.1} parent=1 // pred_check_branch
      %2045 = sbr.rel (0) target = $region41
    $region40: #{_forward.1} parent=1 // pred_region
      %2047 = dma.done [#allocation4], 256
    $region41: #{_forward.1} parent=1 // pred_fallthru
      _
    %2048 = vsyncpa [#allocation3], 1
    %2049 = vsyncpa [#allocation4], 1

</llo_original>
